<compile_context>
chip_gen: v7x
topology: tpu7x:2x2x1
jax: 0.10.0
libtpu: 0.0.40
codegen_flags: <defaults>
</compile_context>

<pallas_src>
import functools

import jax
import jax.numpy as jnp
from jax.experimental import pallas as pl
from jax.experimental.pallas import tpu as pltpu

_MIB = 1024 * 1024


# --------------------------------------------------------------------------
# Fused Pallas kernel
# --------------------------------------------------------------------------
def _bottleneck_kernel(xa_ref, xt_ref, xb_ref,
                       w1_ref, b1_ref, w2_ref, b2_ref, w3_ref, b3_ref,
                       o_ref, h1_ref, im_ref):
    _, th, w, cin = xa_ref.shape
    p = w1_ref.shape[1]
    cout = w3_ref.shape[1]
    j = pl.program_id(1)
    nj = pl.num_programs(1)
    f32, bf16 = jnp.float32, jnp.bfloat16

    # conv2's zero padding lives in the h1 scratch.  NOTE: this zeroing is
    # load-bearing — conv1+BN1+ReLU of a zero input is ReLU(b1) != 0, so the
    # padding positions must be re-zeroed *after* conv1.  Only the two pad
    # columns are written here (targeted stores); pad rows handled below.
    h1_ref[:, 0:1, :] = jnp.zeros((th + 2, 1, p), bf16)
    h1_ref[:, w + 1:w + 2, :] = jnp.zeros((th + 2, 1, p), bf16)

    # ---- conv1 (1x1, BN1 folded into w1) + bias + ReLU -> bf16 scratch ----
    x_body = xa_ref[0]                                       # (th, W, Cin) f32
    body = jnp.dot(x_body.reshape(th * w, cin).astype(bf16), w1_ref[...],
                   preferred_element_type=f32)
    body = jnp.maximum(body + b1_ref[...], 0.0)
    h1_ref[1:th + 1, 1:w + 1, :] = body.astype(bf16).reshape(th, w, p)

    # Halo rows: conv1 of the clamped neighbour rows (rows j*th-1 and (j+1)*th).
    top = jnp.dot(xt_ref[0, 0].astype(bf16), w1_ref[...],
                  preferred_element_type=f32)
    h1_ref[0:1, 1:w + 1, :] = (
        jnp.maximum(top + b1_ref[...], 0.0).astype(bf16).reshape(1, w, p))

    bot = jnp.dot(xb_ref[0, 0].astype(bf16), w1_ref[...],
                  preferred_element_type=f32)
    h1_ref[th + 1:th + 2, 1:w + 1, :] = (
        jnp.maximum(bot + b1_ref[...], 0.0).astype(bf16).reshape(1, w, p))

    @pl.when(j == 0)                         # top image edge -> padding row
    def _():
        h1_ref[0:1, 1:w + 1, :] = jnp.zeros((1, w, p), bf16)

    @pl.when(j == nj - 1)                    # bottom image edge -> padding row
    def _():
        h1_ref[th + 1:th + 2, 1:w + 1, :] = jnp.zeros((1, w, p), bf16)

    # ---- conv2 (3x3, pad=1, stride=1): pack the nine shifted bf16 windows
    #      into a (th, W, 9P) VMEM im2col tile, then ONE K=9P MXU matmul. ----
    for dh in range(3):
        for dw in range(3):
            k = dh * 3 + dw
            im_ref[:, :, k * p:(k + 1) * p] = h1_ref[dh:dh + th, dw:dw + w, :]
    t2 = jnp.dot(im_ref[...].reshape(th * w, 9 * p), w2_ref[...],
                 preferred_element_type=f32)
    t2 = jnp.maximum(t2 + b2_ref[...], 0.0)  # BN2 scale folded into w2

    # ---- conv3 (1x1, BN3 folded) + residual add (f32 identity) + ReLU ----
    u = jnp.dot(t2.astype(bf16), w3_ref[...], preferred_element_type=f32)
    u = u + b3_ref[...] + x_body.reshape(th * w, cout)
    o_ref[0] = jnp.maximum(u, 0.0).reshape(th, w, cout)


# --------------------------------------------------------------------------
# Glue
# --------------------------------------------------------------------------
def _fold_bn(gamma, beta, mean, var, eps=1e-5):
    scale = (gamma / jnp.sqrt(var + eps)).astype(jnp.float32)
    bias = (beta - mean * scale).astype(jnp.float32)
    return scale, bias


def _vmem_capacity_bytes():
    try:
        cap = getattr(pltpu.get_tpu_info(), "vmem_capacity_bytes", None)
        if cap:
            return int(cap)
    except Exception:
        pass
    return 64 * _MIB        # conservative default (v7x per-TensorCore VMEM)


def _tile_vmem_bytes(th, w, cin, planes, cout):
    """Rough per-step VMEM footprint for a row-tile of height th."""
    streams = 2 * (th * w * cin * 4 + 2 * w * cin * 4 + th * w * cout * 4)
    weights = 2 * ((cin * planes + 9 * planes * planes + planes * cout) * 2
                   + (2 * planes + cout) * 4)
    scratch = (th + 2) * (w + 2) * planes * 2 + th * w * 9 * planes * 2
    temps = th * w * (cin + 3 * planes + 2 * cout) * 4
    return streams + weights + scratch + temps


def _pick_tile_h(n, h, w, cin, planes, cout):
    """Largest divisor of H whose tile fits a generation-aware VMEM budget,
    preferring >=2 total grid steps so both v7x TensorCores get work."""
    budget = int(0.45 * _vmem_capacity_bytes())
    fitting = [d for d in range(1, h + 1)
               if h % d == 0 and _tile_vmem_bytes(d, w, cin, planes, cout) <= budget]
    if not fitting:
        # TODO(synk): cdiv-style grid with a masked tail for pathological shapes.
        fitting = [1]
    best = max(fitting)
    if n * (h // best) < 2:
        multi = [d for d in fitting if h // d >= 2]
        if multi:
            best = max(multi)
    return best


def _bottleneck_nhwc(x, params, tile_h):
    x = x.astype(jnp.float32)
    n, h, w, cin = x.shape

    # conv1 (1x1): torch OIHW (P, Cin, 1, 1) -> (Cin, P); fold BN1 scale.
    w1 = jnp.transpose(params["w1"][:, :, 0, 0], (1, 0))
    s1, b1 = _fold_bn(params["g1"], params["be1"], params["m1"], params["v1"])
    planes = w1.shape[1]
    w1f = (w1 * s1[None, :]).astype(jnp.bfloat16)

    # conv2 (3x3): (P, P, 3, 3) -> (3, 3, Pin, Pout) -> (9*Pin, Pout); fold BN2.
    w2 = jnp.transpose(params["w2"], (2, 3, 1, 0))
    s2, b2 = _fold_bn(params["g2"], params["be2"], params["m2"], params["v2"])
    w2f = (w2 * s2[None, None, None, :]).reshape(9 * planes, planes).astype(jnp.bfloat16)

    # conv3 (1x1): (4P, P, 1, 1) -> (P, 4P); fold BN3.
    w3 = jnp.transpose(params["w3"][:, :, 0, 0], (1, 0))
    s3, b3 = _fold_bn(params["g3"], params["be3"], params["m3"], params["v3"])
    cout = w3.shape[1]
    w3f = (w3 * s3[None, :]).astype(jnp.bfloat16)

    assert cin == cout, "identity residual requires inplanes == planes*expansion"

    if tile_h is None:
        tile_h = _pick_tile_h(n, h, w, cin, planes, cout)
    th = tile_h
    assert h % th == 0, "tile_h must divide H"

    cap = _vmem_capacity_bytes()
    footprint = _tile_vmem_bytes(th, w, cin, planes, cout)
    vmem_limit = int(min(cap * 3 // 4, max(32 * _MIB, footprint * 5 // 4)))

    grid = (n, h // th)
    flops = (2 * n * (h + 2 * (h // th)) * w * cin * planes
             + 2 * n * h * w * (9 * planes * planes + planes * cout))
    bytes_accessed = (x.size * 4                              # x read once (+halo rows)
                      + n * (h // th) * 2 * w * cin * 4
                      + n * h * w * cout * 4                  # output
                      + 2 * (w1f.size + w2f.size + w3f.size)
                      + 4 * (b1.size + b2.size + b3.size))

    out = pl.pallas_call(
        _bottleneck_kernel,
        out_shape=jax.ShapeDtypeStruct((n, h, w, cout), jnp.float32),
        grid=grid,
        in_specs=[
            # x body tile (also serves as the f32 identity for the residual)
            pl.BlockSpec((1, th, w, cin), lambda i, j: (i, j, 0, 0)),
            # clamped single-row halos (zeroed in-kernel at the image edges)
            pl.BlockSpec((1, 1, w, cin),
                         lambda i, j: (i, jnp.maximum(j * th - 1, 0), 0, 0)),
            pl.BlockSpec((1, 1, w, cin),
                         lambda i, j: (i, jnp.minimum((j + 1) * th, h - 1), 0, 0)),
            # weights / biases: constant index_map -> stay resident in VMEM
            pl.BlockSpec((cin, planes), lambda i, j: (0, 0)),
            pl.BlockSpec((1, planes), lambda i, j: (0, 0)),
            pl.BlockSpec((9 * planes, planes), lambda i, j: (0, 0)),
            pl.BlockSpec((1, planes), lambda i, j: (0, 0)),
            pl.BlockSpec((planes, cout), lambda i, j: (0, 0)),
            pl.BlockSpec((1, cout), lambda i, j: (0, 0)),
        ],
        out_specs=pl.BlockSpec((1, th, w, cout), lambda i, j: (i, j, 0, 0)),
        scratch_shapes=[
            pltpu.VMEM((th + 2, w + 2, planes), jnp.bfloat16),   # padded conv1 out
            pltpu.VMEM((th, w, 9 * planes), jnp.bfloat16),       # conv2 im2col tile
        ],
        compiler_params=pltpu.CompilerParams(
            dimension_semantics=("parallel", "parallel"),
            vmem_limit_bytes=vmem_limit),
        cost_estimate=pl.CostEstimate(flops=flops, transcendentals=0,
                                      bytes_accessed=bytes_accessed),
    )(x, x, x,
      w1f, b1.reshape(1, planes),
      w2f, b2.reshape(1, planes),
      w3f, b3.reshape(1, cout))
    return out


@functools.partial(jax.jit, static_argnames=("tile_h",))
def bottleneck_forward(x_nchw, params, tile_h=None):
    """NCHW wrapper matching the PyTorch module interface."""
    x = jnp.transpose(x_nchw, (0, 2, 3, 1))
    out = _bottleneck_nhwc(x, params, tile_h)
    return jnp.transpose(out, (0, 3, 1, 2))


@functools.partial(jax.jit, static_argnames=("tile_h",))
def bottleneck_forward_nhwc(x_nhwc, params, tile_h=None):
    """NHWC entry point: use this in a block chain to avoid the transposes."""
    # TODO(synk): a bf16-output/-residual variant for chained blocks would halve
    #             the dominant HBM streams; kept f32 to match module semantics.
    return _bottleneck_nhwc(x_nhwc, params, tile_h)


# --------------------------------------------------------------------------
# Pure-JAX reference (f32, HIGHEST precision) for self-check
# --------------------------------------------------------------------------
def _ref_forward(x_nchw, params):
    x = jnp.transpose(x_nchw, (0, 2, 3, 1)).astype(jnp.float32)

    def conv(x, w_oihw, padding):
        w_hwio = jnp.transpose(w_oihw, (2, 3, 1, 0))
        return jax.lax.conv_general_dilated(
            x, w_hwio, window_strides=(1, 1), padding=padding,
            dimension_numbers=("NHWC", "HWIO", "NHWC"),
            precision=jax.lax.Precision.HIGHEST)

    def bn(x, g, b, mu, var, eps=1e-5):
        return (x - mu) / jnp.sqrt(var + eps) * g + b

    out = jax.nn.relu(bn(conv(x, params["w1"], "VALID"),
                         params["g1"], params["be1"], params["m1"], params["v1"]))
    out = jax.nn.relu(bn(conv(out, params["w2"], "SAME"),
                         params["g2"], params["be2"], params["m2"], params["v2"]))
    out = bn(conv(out, params["w3"], "VALID"),
             params["g3"], params["be3"], params["m3"], params["v3"])
    out = jax.nn.relu(out + x)
    return jnp.transpose(out, (0, 3, 1, 2))


# --------------------------------------------------------------------------
# Main
# --------------------------------------------------------------------------
if __name__ == "__main__":
    inplanes, planes, expansion = 32, 8, 4    # identity residual => inplanes == planes*4
    batch, height, width = 2, 16, 16

    key = jax.random.PRNGKey(0)
    ks = jax.random.split(key, 16)

    def normal(k, shape, scale):
        return (scale * jax.random.normal(k, shape)).astype(jnp.float32)

    params = {
        # conv weights (PyTorch OIHW layout, bias=False)
        "w1": normal(ks[0], (planes, inplanes, 1, 1), 1.0 / jnp.sqrt(inplanes)),
        "w2": normal(ks[1], (planes, planes, 3, 3), 1.0 / jnp.sqrt(9.0 * planes)),
        "w3": normal(ks[2], (planes * expansion, planes, 1, 1), 1.0 / jnp.sqrt(planes)),
        # BatchNorm parameters (inference-mode running stats)
        "g1": normal(ks[3], (planes,), 0.2) + 1.0,
        "be1": normal(ks[4], (planes,), 0.2),
        "m1": normal(ks[5], (planes,), 0.2),
        "v1": jnp.abs(normal(ks[6], (planes,), 0.2)) + 1.0,
        "g2": normal(ks[7], (planes,), 0.2) + 1.0,
        "be2": normal(ks[8], (planes,), 0.2),
        "m2": normal(ks[9], (planes,), 0.2),
        "v2": jnp.abs(normal(ks[10], (planes,), 0.2)) + 1.0,
        "g3": normal(ks[11], (planes * expansion,), 0.2) + 1.0,
        "be3": normal(ks[12], (planes * expansion,), 0.2),
        "m3": normal(ks[13], (planes * expansion,), 0.2),
        "v3": jnp.abs(normal(ks[14], (planes * expansion,), 0.2)) + 1.0,
    }

    x = jax.random.normal(ks[15], (batch, inplanes, height, width), dtype=jnp.float32)

    # tile_h=4 => grid (2, 4): exercises interior and edge (padding-row) tiles.
    out_tiled = jax.block_until_ready(bottleneck_forward(x, params, tile_h=4))
    # auto tile: exercises the bytes-based picker (single row-tile per image).
    out_auto = jax.block_until_ready(bottleneck_forward(x, params))
    ref = jax.block_until_ready(jax.jit(_ref_forward)(x, params))

    ref_scale = float(jnp.max(jnp.abs(ref)))
    for out in (out_tiled, out_auto):
        assert out.shape == (batch, planes * expansion, height, width), out.shape
        max_err = float(jnp.max(jnp.abs(out - ref)))
        # bf16 MXU inputs with f32 accumulation: allow a few % relative error.
        assert max_err <= 4e-2 * ref_scale + 1e-3, (
            f"max abs error {max_err} (ref max {ref_scale})")

    print("KERNEL_OK")
</pallas_src>

<mosaic_0001>
module attributes {stable_mosaic.version = 11 : i64} {
  func.func @_bottleneck_kernel(%arg0: i32, %arg1: i32, %arg2: memref<1x4x16x32xf32, #tpu.memory_space<vmem>>, %arg3: memref<1x1x16x32xf32, #tpu.memory_space<vmem>>, %arg4: memref<1x1x16x32xf32, #tpu.memory_space<vmem>>, %arg5: memref<32x8xbf16, #tpu.memory_space<vmem>>, %arg6: memref<1x8xf32, #tpu.memory_space<vmem>>, %arg7: memref<72x8xbf16, #tpu.memory_space<vmem>>, %arg8: memref<1x8xf32, #tpu.memory_space<vmem>>, %arg9: memref<8x32xbf16, #tpu.memory_space<vmem>>, %arg10: memref<1x32xf32, #tpu.memory_space<vmem>>, %arg11: memref<1x4x16x32xf32, #tpu.memory_space<vmem>>, %arg12: memref<6x18x8xbf16, #tpu.memory_space<vmem>>, %arg13: memref<4x16x72xbf16, #tpu.memory_space<vmem>>) attributes {dimension_semantics = [#tpu.dimension_semantics<parallel>, #tpu.dimension_semantics<parallel>], iteration_bounds = array<i64: 2, 4>, scalar_prefetch = 0 : i64, scratch_operands = 2 : i64, tpu.core_type = #tpu.core_type<tc>, window_params = [{transform_indices = @transform_0, window_bounds = array<i64: 1, 4, 16, 32>}, {transform_indices = @transform_1, window_bounds = array<i64: 1, 1, 16, 32>}, {transform_indices = @transform_2, window_bounds = array<i64: 1, 1, 16, 32>}, {pipeline_mode = #tpu.pipeline_mode<synchronous>, transform_indices = @transform_3, window_bounds = array<i64: 32, 8>}, {pipeline_mode = #tpu.pipeline_mode<synchronous>, transform_indices = @transform_4, window_bounds = array<i64: 1, 8>}, {pipeline_mode = #tpu.pipeline_mode<synchronous>, transform_indices = @transform_5, window_bounds = array<i64: 72, 8>}, {pipeline_mode = #tpu.pipeline_mode<synchronous>, transform_indices = @transform_6, window_bounds = array<i64: 1, 8>}, {pipeline_mode = #tpu.pipeline_mode<synchronous>, transform_indices = @transform_7, window_bounds = array<i64: 8, 32>}, {pipeline_mode = #tpu.pipeline_mode<synchronous>, transform_indices = @transform_8, window_bounds = array<i64: 1, 32>}, {transform_indices = @transform_9, window_bounds = array<i64: 1, 4, 16, 32>}]} {
    %cst = arith.constant 0.000000e+00 : bf16
    %0 = vector.broadcast %cst : bf16 to vector<6x1x8xbf16>
    %c0 = arith.constant 0 : index
    %c0_0 = arith.constant 0 : index
    %c0_1 = arith.constant 0 : index
    %1 = vector.load %arg12[%c0, %c0_0, %c0_1] : memref<6x18x8xbf16, #tpu.memory_space<vmem>>, vector<6x1x8xbf16>
    tpu.vector_store %arg12[%c0, %c0_0, %c0_1], %0 {strides = array<i32>} : memref<6x18x8xbf16, #tpu.memory_space<vmem>>, vector<6x1x8xbf16>,
    %cst_2 = arith.constant 0.000000e+00 : bf16
    %2 = vector.broadcast %cst_2 : bf16 to vector<6x1x8xbf16>
    %c0_3 = arith.constant 0 : index
    %c17 = arith.constant 17 : index
    %c0_4 = arith.constant 0 : index
    %3 = vector.load %arg12[%c0_3, %c17, %c0_4] : memref<6x18x8xbf16, #tpu.memory_space<vmem>>, vector<6x1x8xbf16>
    tpu.vector_store %arg12[%c0_3, %c17, %c0_4], %2 {strides = array<i32>} : memref<6x18x8xbf16, #tpu.memory_space<vmem>>, vector<6x1x8xbf16>,
    %c0_5 = arith.constant 0 : index
    %c0_6 = arith.constant 0 : index
    %c0_7 = arith.constant 0 : index
    %c0_8 = arith.constant 0 : index
    %4 = vector.load %arg2[%c0_5, %c0_6, %c0_7, %c0_8] : memref<1x4x16x32xf32, #tpu.memory_space<vmem>>, vector<1x4x16x32xf32>
    %5 = vector.shape_cast %4 : vector<1x4x16x32xf32> to vector<4x16x32xf32>
    %6 = vector.shape_cast %5 : vector<4x16x32xf32> to vector<64x32xf32>
    %7 = arith.truncf %6 : vector<64x32xf32> to vector<64x32xbf16>
    %c0_9 = arith.constant 0 : index
    %c0_10 = arith.constant 0 : index
    %8 = vector.load %arg5[%c0_9, %c0_10] : memref<32x8xbf16, #tpu.memory_space<vmem>>, vector<32x8xbf16>
    %cst_11 = arith.constant dense<0.000000e+00> : vector<64x8xf32>
    %9 = tpu.matmul %7, %8, %cst_11 {dimension_numbers = #tpu.dot_dimension_numbers<[1], [0], [0], [1], [0, 0, 1, 1], [], []>} : vector<64x32xbf16>, vector<32x8xbf16>, vector<64x8xf32> -> vector<64x8xf32>
    %c0_12 = arith.constant 0 : index
    %c0_13 = arith.constant 0 : index
    %10 = vector.load %arg6[%c0_12, %c0_13] : memref<1x8xf32, #tpu.memory_space<vmem>>, vector<1x8xf32>
    %11 = vector.broadcast %10 : vector<1x8xf32> to vector<64x8xf32>
    %12 = arith.addf %9, %11 : vector<64x8xf32>
    %cst_14 = arith.constant 0.000000e+00 : f32
    %13 = vector.broadcast %cst_14 : f32 to vector<64x8xf32>
    %14 = arith.maximumf %12, %13 : vector<64x8xf32>
    %15 = arith.truncf %14 : vector<64x8xf32> to vector<64x8xbf16>
    %16 = vector.shape_cast %15 : vector<64x8xbf16> to vector<4x16x8xbf16>
    %c1 = arith.constant 1 : index
    %c1_15 = arith.constant 1 : index
    %c0_16 = arith.constant 0 : index
    %17 = vector.load %arg12[%c1, %c1_15, %c0_16] : memref<6x18x8xbf16, #tpu.memory_space<vmem>>, vector<4x16x8xbf16>
    tpu.vector_store %arg12[%c1, %c1_15, %c0_16], %16 {strides = array<i32>} : memref<6x18x8xbf16, #tpu.memory_space<vmem>>, vector<4x16x8xbf16>,
    %c0_17 = arith.constant 0 : index
    %c0_18 = arith.constant 0 : index
    %c0_19 = arith.constant 0 : index
    %c0_20 = arith.constant 0 : index
    %18 = vector.load %arg3[%c0_17, %c0_18, %c0_19, %c0_20] : memref<1x1x16x32xf32, #tpu.memory_space<vmem>>, vector<1x1x16x32xf32>
    %19 = vector.shape_cast %18 : vector<1x1x16x32xf32> to vector<16x32xf32>
    %20 = arith.truncf %19 : vector<16x32xf32> to vector<16x32xbf16>
    %c0_21 = arith.constant 0 : index
    %c0_22 = arith.constant 0 : index
    %21 = vector.load %arg5[%c0_21, %c0_22] : memref<32x8xbf16, #tpu.memory_space<vmem>>, vector<32x8xbf16>
    %cst_23 = arith.constant dense<0.000000e+00> : vector<16x8xf32>
    %22 = tpu.matmul %20, %21, %cst_23 {dimension_numbers = #tpu.dot_dimension_numbers<[1], [0], [0], [1], [0, 0, 1, 1], [], []>} : vector<16x32xbf16>, vector<32x8xbf16>, vector<16x8xf32> -> vector<16x8xf32>
    %c0_24 = arith.constant 0 : index
    %c0_25 = arith.constant 0 : index
    %23 = vector.load %arg6[%c0_24, %c0_25] : memref<1x8xf32, #tpu.memory_space<vmem>>, vector<1x8xf32>
    %24 = vector.broadcast %23 : vector<1x8xf32> to vector<16x8xf32>
    %25 = arith.addf %22, %24 : vector<16x8xf32>
    %cst_26 = arith.constant 0.000000e+00 : f32
    %26 = vector.broadcast %cst_26 : f32 to vector<16x8xf32>
    %27 = arith.maximumf %25, %26 : vector<16x8xf32>
    %28 = arith.truncf %27 : vector<16x8xf32> to vector<16x8xbf16>
    %29 = vector.shape_cast %28 : vector<16x8xbf16> to vector<1x16x8xbf16>
    %c0_27 = arith.constant 0 : index
    %c1_28 = arith.constant 1 : index
    %c0_29 = arith.constant 0 : index
    %30 = vector.load %arg12[%c0_27, %c1_28, %c0_29] : memref<6x18x8xbf16, #tpu.memory_space<vmem>>, vector<1x16x8xbf16>
    tpu.vector_store %arg12[%c0_27, %c1_28, %c0_29], %29 {strides = array<i32>} : memref<6x18x8xbf16, #tpu.memory_space<vmem>>, vector<1x16x8xbf16>,
    %c0_30 = arith.constant 0 : index
    %c0_31 = arith.constant 0 : index
    %c0_32 = arith.constant 0 : index
    %c0_33 = arith.constant 0 : index
    %31 = vector.load %arg4[%c0_30, %c0_31, %c0_32, %c0_33] : memref<1x1x16x32xf32, #tpu.memory_space<vmem>>, vector<1x1x16x32xf32>
    %32 = vector.shape_cast %31 : vector<1x1x16x32xf32> to vector<16x32xf32>
    %33 = arith.truncf %32 : vector<16x32xf32> to vector<16x32xbf16>
    %c0_34 = arith.constant 0 : index
    %c0_35 = arith.constant 0 : index
    %34 = vector.load %arg5[%c0_34, %c0_35] : memref<32x8xbf16, #tpu.memory_space<vmem>>, vector<32x8xbf16>
    %cst_36 = arith.constant dense<0.000000e+00> : vector<16x8xf32>
    %35 = tpu.matmul %33, %34, %cst_36 {dimension_numbers = #tpu.dot_dimension_numbers<[1], [0], [0], [1], [0, 0, 1, 1], [], []>} : vector<16x32xbf16>, vector<32x8xbf16>, vector<16x8xf32> -> vector<16x8xf32>
    %c0_37 = arith.constant 0 : index
    %c0_38 = arith.constant 0 : index
    %36 = vector.load %arg6[%c0_37, %c0_38] : memref<1x8xf32, #tpu.memory_space<vmem>>, vector<1x8xf32>
    %37 = vector.broadcast %36 : vector<1x8xf32> to vector<16x8xf32>
    %38 = arith.addf %35, %37 : vector<16x8xf32>
    %cst_39 = arith.constant 0.000000e+00 : f32
    %39 = vector.broadcast %cst_39 : f32 to vector<16x8xf32>
    %40 = arith.maximumf %38, %39 : vector<16x8xf32>
    %41 = arith.truncf %40 : vector<16x8xf32> to vector<16x8xbf16>
    %42 = vector.shape_cast %41 : vector<16x8xbf16> to vector<1x16x8xbf16>
    %c5 = arith.constant 5 : index
    %c1_40 = arith.constant 1 : index
    %c0_41 = arith.constant 0 : index
    %43 = vector.load %arg12[%c5, %c1_40, %c0_41] : memref<6x18x8xbf16, #tpu.memory_space<vmem>>, vector<1x16x8xbf16>
    tpu.vector_store %arg12[%c5, %c1_40, %c0_41], %42 {strides = array<i32>} : memref<6x18x8xbf16, #tpu.memory_space<vmem>>, vector<1x16x8xbf16>,
    %c0_i32 = arith.constant 0 : i32
    %44 = arith.cmpi eq, %arg1, %c0_i32 : i32
    %45 = arith.extui %44 : i1 to i32
    %c0_i32_42 = arith.constant 0 : i32
    %46 = arith.cmpi ne, %45, %c0_i32_42 : i32
    scf.if %46 {
      %cst_108 = arith.constant 0.000000e+00 : bf16
      %91 = vector.broadcast %cst_108 : bf16 to vector<1x16x8xbf16>
      %c0_109 = arith.constant 0 : index
      %c1_110 = arith.constant 1 : index
      %c0_111 = arith.constant 0 : index
      %92 = vector.load %arg12[%c0_109, %c1_110, %c0_111] : memref<6x18x8xbf16, #tpu.memory_space<vmem>>, vector<1x16x8xbf16>
      tpu.vector_store %arg12[%c0_109, %c1_110, %c0_111], %91 {strides = array<i32>} : memref<6x18x8xbf16, #tpu.memory_space<vmem>>, vector<1x16x8xbf16>,
    } else {
    }
    %c3_i32 = arith.constant 3 : i32
    %47 = arith.cmpi eq, %arg1, %c3_i32 : i32
    %48 = arith.extui %47 : i1 to i32
    %c0_i32_43 = arith.constant 0 : i32
    %49 = arith.cmpi ne, %48, %c0_i32_43 : i32
    scf.if %49 {
      %cst_108 = arith.constant 0.000000e+00 : bf16
      %91 = vector.broadcast %cst_108 : bf16 to vector<1x16x8xbf16>
      %c5_109 = arith.constant 5 : index
      %c1_110 = arith.constant 1 : index
      %c0_111 = arith.constant 0 : index
      %92 = vector.load %arg12[%c5_109, %c1_110, %c0_111] : memref<6x18x8xbf16, #tpu.memory_space<vmem>>, vector<1x16x8xbf16>
      tpu.vector_store %arg12[%c5_109, %c1_110, %c0_111], %91 {strides = array<i32>} : memref<6x18x8xbf16, #tpu.memory_space<vmem>>, vector<1x16x8xbf16>,
    } else {
    }
    %c0_44 = arith.constant 0 : index
    %c0_45 = arith.constant 0 : index
    %c0_46 = arith.constant 0 : index
    %50 = vector.load %arg12[%c0_44, %c0_45, %c0_46] : memref<6x18x8xbf16, #tpu.memory_space<vmem>>, vector<4x16x8xbf16>
    %c0_47 = arith.constant 0 : index
    %c0_48 = arith.constant 0 : index
    %c0_49 = arith.constant 0 : index
    %51 = vector.load %arg13[%c0_47, %c0_48, %c0_49] : memref<4x16x72xbf16, #tpu.memory_space<vmem>>, vector<4x16x8xbf16>
    tpu.vector_store %arg13[%c0_47, %c0_48, %c0_49], %50 {strides = array<i32>} : memref<4x16x72xbf16, #tpu.memory_space<vmem>>, vector<4x16x8xbf16>,
    %c0_50 = arith.constant 0 : index
    %c1_51 = arith.constant 1 : index
    %c0_52 = arith.constant 0 : index
    %52 = vector.load %arg12[%c0_50, %c1_51, %c0_52] : memref<6x18x8xbf16, #tpu.memory_space<vmem>>, vector<4x16x8xbf16>
    %c0_53 = arith.constant 0 : index
    %c0_54 = arith.constant 0 : index
    %c8 = arith.constant 8 : index
    %53 = vector.load %arg13[%c0_53, %c0_54, %c8] : memref<4x16x72xbf16, #tpu.memory_space<vmem>>, vector<4x16x8xbf16>
    tpu.vector_store %arg13[%c0_53, %c0_54, %c8], %52 {strides = array<i32>} : memref<4x16x72xbf16, #tpu.memory_space<vmem>>, vector<4x16x8xbf16>,
    %c0_55 = arith.constant 0 : index
    %c2 = arith.constant 2 : index
    %c0_56 = arith.constant 0 : index
    %54 = vector.load %arg12[%c0_55, %c2, %c0_56] : memref<6x18x8xbf16, #tpu.memory_space<vmem>>, vector<4x16x8xbf16>
    %c0_57 = arith.constant 0 : index
    %c0_58 = arith.constant 0 : index
    %c16 = arith.constant 16 : index
    %55 = vector.load %arg13[%c0_57, %c0_58, %c16] : memref<4x16x72xbf16, #tpu.memory_space<vmem>>, vector<4x16x8xbf16>
    tpu.vector_store %arg13[%c0_57, %c0_58, %c16], %54 {strides = array<i32>} : memref<4x16x72xbf16, #tpu.memory_space<vmem>>, vector<4x16x8xbf16>,
    %c1_59 = arith.constant 1 : index
    %c0_60 = arith.constant 0 : index
    %c0_61 = arith.constant 0 : index
    %56 = vector.load %arg12[%c1_59, %c0_60, %c0_61] : memref<6x18x8xbf16, #tpu.memory_space<vmem>>, vector<4x16x8xbf16>
    %c0_62 = arith.constant 0 : index
    %c0_63 = arith.constant 0 : index
    %c24 = arith.constant 24 : index
    %57 = vector.load %arg13[%c0_62, %c0_63, %c24] : memref<4x16x72xbf16, #tpu.memory_space<vmem>>, vector<4x16x8xbf16>
    tpu.vector_store %arg13[%c0_62, %c0_63, %c24], %56 {strides = array<i32>} : memref<4x16x72xbf16, #tpu.memory_space<vmem>>, vector<4x16x8xbf16>,
    %c1_64 = arith.constant 1 : index
    %c1_65 = arith.constant 1 : index
    %c0_66 = arith.constant 0 : index
    %58 = vector.load %arg12[%c1_64, %c1_65, %c0_66] : memref<6x18x8xbf16, #tpu.memory_space<vmem>>, vector<4x16x8xbf16>
    %c0_67 = arith.constant 0 : index
    %c0_68 = arith.constant 0 : index
    %c32 = arith.constant 32 : index
    %59 = vector.load %arg13[%c0_67, %c0_68, %c32] : memref<4x16x72xbf16, #tpu.memory_space<vmem>>, vector<4x16x8xbf16>
    tpu.vector_store %arg13[%c0_67, %c0_68, %c32], %58 {strides = array<i32>} : memref<4x16x72xbf16, #tpu.memory_space<vmem>>, vector<4x16x8xbf16>,
    %c1_69 = arith.constant 1 : index
    %c2_70 = arith.constant 2 : index
    %c0_71 = arith.constant 0 : index
    %60 = vector.load %arg12[%c1_69, %c2_70, %c0_71] : memref<6x18x8xbf16, #tpu.memory_space<vmem>>, vector<4x16x8xbf16>
    %c0_72 = arith.constant 0 : index
    %c0_73 = arith.constant 0 : index
    %c40 = arith.constant 40 : index
    %61 = vector.load %arg13[%c0_72, %c0_73, %c40] : memref<4x16x72xbf16, #tpu.memory_space<vmem>>, vector<4x16x8xbf16>
    tpu.vector_store %arg13[%c0_72, %c0_73, %c40], %60 {strides = array<i32>} : memref<4x16x72xbf16, #tpu.memory_space<vmem>>, vector<4x16x8xbf16>,
    %c2_74 = arith.constant 2 : index
    %c0_75 = arith.constant 0 : index
    %c0_76 = arith.constant 0 : index
    %62 = vector.load %arg12[%c2_74, %c0_75, %c0_76] : memref<6x18x8xbf16, #tpu.memory_space<vmem>>, vector<4x16x8xbf16>
    %c0_77 = arith.constant 0 : index
    %c0_78 = arith.constant 0 : index
    %c48 = arith.constant 48 : index
    %63 = vector.load %arg13[%c0_77, %c0_78, %c48] : memref<4x16x72xbf16, #tpu.memory_space<vmem>>, vector<4x16x8xbf16>
    tpu.vector_store %arg13[%c0_77, %c0_78, %c48], %62 {strides = array<i32>} : memref<4x16x72xbf16, #tpu.memory_space<vmem>>, vector<4x16x8xbf16>,
    %c2_79 = arith.constant 2 : index
    %c1_80 = arith.constant 1 : index
    %c0_81 = arith.constant 0 : index
    %64 = vector.load %arg12[%c2_79, %c1_80, %c0_81] : memref<6x18x8xbf16, #tpu.memory_space<vmem>>, vector<4x16x8xbf16>
    %c0_82 = arith.constant 0 : index
    %c0_83 = arith.constant 0 : index
    %c56 = arith.constant 56 : index
    %65 = vector.load %arg13[%c0_82, %c0_83, %c56] : memref<4x16x72xbf16, #tpu.memory_space<vmem>>, vector<4x16x8xbf16>
    tpu.vector_store %arg13[%c0_82, %c0_83, %c56], %64 {strides = array<i32>} : memref<4x16x72xbf16, #tpu.memory_space<vmem>>, vector<4x16x8xbf16>,
    %c2_84 = arith.constant 2 : index
    %c2_85 = arith.constant 2 : index
    %c0_86 = arith.constant 0 : index
    %66 = vector.load %arg12[%c2_84, %c2_85, %c0_86] : memref<6x18x8xbf16, #tpu.memory_space<vmem>>, vector<4x16x8xbf16>
    %c0_87 = arith.constant 0 : index
    %c0_88 = arith.constant 0 : index
    %c64 = arith.constant 64 : index
    %67 = vector.load %arg13[%c0_87, %c0_88, %c64] : memref<4x16x72xbf16, #tpu.memory_space<vmem>>, vector<4x16x8xbf16>
    tpu.vector_store %arg13[%c0_87, %c0_88, %c64], %66 {strides = array<i32>} : memref<4x16x72xbf16, #tpu.memory_space<vmem>>, vector<4x16x8xbf16>,
    %c0_89 = arith.constant 0 : index
    %c0_90 = arith.constant 0 : index
    %c0_91 = arith.constant 0 : index
    %68 = vector.load %arg13[%c0_89, %c0_90, %c0_91] : memref<4x16x72xbf16, #tpu.memory_space<vmem>>, vector<4x16x72xbf16>
    %69 = vector.shape_cast %68 : vector<4x16x72xbf16> to vector<64x72xbf16>
    %c0_92 = arith.constant 0 : index
    %c0_93 = arith.constant 0 : index
    %70 = vector.load %arg7[%c0_92, %c0_93] : memref<72x8xbf16, #tpu.memory_space<vmem>>, vector<72x8xbf16>
    %cst_94 = arith.constant dense<0.000000e+00> : vector<64x8xf32>
    %71 = tpu.matmul %69, %70, %cst_94 {dimension_numbers = #tpu.dot_dimension_numbers<[1], [0], [0], [1], [0, 0, 1, 1], [], []>} : vector<64x72xbf16>, vector<72x8xbf16>, vector<64x8xf32> -> vector<64x8xf32>
    %c0_95 = arith.constant 0 : index
    %c0_96 = arith.constant 0 : index
    %72 = vector.load %arg8[%c0_95, %c0_96] : memref<1x8xf32, #tpu.memory_space<vmem>>, vector<1x8xf32>
    %73 = vector.broadcast %72 : vector<1x8xf32> to vector<64x8xf32>
    %74 = arith.addf %71, %73 : vector<64x8xf32>
    %cst_97 = arith.constant 0.000000e+00 : f32
    %75 = vector.broadcast %cst_97 : f32 to vector<64x8xf32>
    %76 = arith.maximumf %74, %75 : vector<64x8xf32>
    %77 = arith.truncf %76 : vector<64x8xf32> to vector<64x8xbf16>
    %c0_98 = arith.constant 0 : index
    %c0_99 = arith.constant 0 : index
    %78 = vector.load %arg9[%c0_98, %c0_99] : memref<8x32xbf16, #tpu.memory_space<vmem>>, vector<8x32xbf16>
    %cst_100 = arith.constant dense<0.000000e+00> : vector<64x32xf32>
    %79 = tpu.matmul %77, %78, %cst_100 {dimension_numbers = #tpu.dot_dimension_numbers<[1], [0], [0], [1], [0, 0, 1, 1], [], []>} : vector<64x8xbf16>, vector<8x32xbf16>, vector<64x32xf32> -> vector<64x32xf32>
    %c0_101 = arith.constant 0 : index
    %c0_102 = arith.constant 0 : index
    %80 = vector.load %arg10[%c0_101, %c0_102] : memref<1x32xf32, #tpu.memory_space<vmem>>, vector<1x32xf32>
    %81 = vector.broadcast %80 : vector<1x32xf32> to vector<64x32xf32>
    %82 = arith.addf %79, %81 : vector<64x32xf32>
    %83 = vector.shape_cast %5 : vector<4x16x32xf32> to vector<64x32xf32>
    %84 = arith.addf %82, %83 : vector<64x32xf32>
    %cst_103 = arith.constant 0.000000e+00 : f32
    %85 = vector.broadcast %cst_103 : f32 to vector<64x32xf32>
    %86 = arith.maximumf %84, %85 : vector<64x32xf32>
    %87 = vector.shape_cast %86 : vector<64x32xf32> to vector<4x16x32xf32>
    %c0_104 = arith.constant 0 : index
    %c0_105 = arith.constant 0 : index
    %c0_106 = arith.constant 0 : index
    %c0_107 = arith.constant 0 : index
    %88 = vector.load %arg11[%c0_104, %c0_105, %c0_106, %c0_107] : memref<1x4x16x32xf32, #tpu.memory_space<vmem>>, vector<1x4x16x32xf32>
    %89 = vector.shape_cast %88 : vector<1x4x16x32xf32> to vector<4x16x32xf32>
    %90 = vector.shape_cast %87 : vector<4x16x32xf32> to vector<1x4x16x32xf32>
    tpu.vector_store %arg11[%c0_104, %c0_105, %c0_106, %c0_107], %90 {strides = array<i32>} : memref<1x4x16x32xf32, #tpu.memory_space<vmem>>, vector<1x4x16x32xf32>,
    return
  }
  func.func @transform_0(%arg0: i32, %arg1: i32) -> (i32, i32, i32, i32) {
    %c0_i32 = arith.constant 0 : i32
    %c0_i32_0 = arith.constant 0 : i32
    %c0_i32_1 = arith.constant 0 : i32
    return %arg0, %arg1, %c0_i32, %c0_i32_0 : i32, i32, i32, i32
  }
  func.func @transform_1(%arg0: i32, %arg1: i32) -> (i32, i32, i32, i32) {
    %c4_i32 = arith.constant 4 : i32
    %0 = arith.muli %arg1, %c4_i32 : i32
    %c1_i32 = arith.constant 1 : i32
    %1 = arith.subi %0, %c1_i32 : i32
    %c0_i32 = arith.constant 0 : i32
    %2 = arith.maxsi %1, %c0_i32 : i32
    %c0_i32_0 = arith.constant 0 : i32
    %c0_i32_1 = arith.constant 0 : i32
    %c0_i32_2 = arith.constant 0 : i32
    return %arg0, %2, %c0_i32_0, %c0_i32_1 : i32, i32, i32, i32
  }
  func.func @transform_2(%arg0: i32, %arg1: i32) -> (i32, i32, i32, i32) {
    %c1_i32 = arith.constant 1 : i32
    %0 = arith.addi %arg1, %c1_i32 : i32
    %c4_i32 = arith.constant 4 : i32
    %1 = arith.muli %0, %c4_i32 : i32
    %c15_i32 = arith.constant 15 : i32
    %2 = arith.minsi %1, %c15_i32 : i32
    %c0_i32 = arith.constant 0 : i32
    %c0_i32_0 = arith.constant 0 : i32
    %c0_i32_1 = arith.constant 0 : i32
    return %arg0, %2, %c0_i32, %c0_i32_0 : i32, i32, i32, i32
  }
  func.func @transform_3(%arg0: i32, %arg1: i32) -> (i32, i32) {
    %c0_i32 = arith.constant 0 : i32
    %c0_i32_0 = arith.constant 0 : i32
    %c0_i32_1 = arith.constant 0 : i32
    return %c0_i32, %c0_i32_0 : i32, i32
  }
  func.func @transform_4(%arg0: i32, %arg1: i32) -> (i32, i32) {
    %c0_i32 = arith.constant 0 : i32
    %c0_i32_0 = arith.constant 0 : i32
    %c0_i32_1 = arith.constant 0 : i32
    return %c0_i32, %c0_i32_0 : i32, i32
  }
  func.func @transform_5(%arg0: i32, %arg1: i32) -> (i32, i32) {
    %c0_i32 = arith.constant 0 : i32
    %c0_i32_0 = arith.constant 0 : i32
    %c0_i32_1 = arith.constant 0 : i32
    return %c0_i32, %c0_i32_0 : i32, i32
  }
  func.func @transform_6(%arg0: i32, %arg1: i32) -> (i32, i32) {
    %c0_i32 = arith.constant 0 : i32
    %c0_i32_0 = arith.constant 0 : i32
    %c0_i32_1 = arith.constant 0 : i32
    return %c0_i32, %c0_i32_0 : i32, i32
  }
  func.func @transform_7(%arg0: i32, %arg1: i32) -> (i32, i32) {
    %c0_i32 = arith.constant 0 : i32
    %c0_i32_0 = arith.constant 0 : i32
    %c0_i32_1 = arith.constant 0 : i32
    return %c0_i32, %c0_i32_0 : i32, i32
  }
  func.func @transform_8(%arg0: i32, %arg1: i32) -> (i32, i32) {
    %c0_i32 = arith.constant 0 : i32
    %c0_i32_0 = arith.constant 0 : i32
    %c0_i32_1 = arith.constant 0 : i32
    return %c0_i32, %c0_i32_0 : i32, i32
  }
  func.func @transform_9(%arg0: i32, %arg1: i32) -> (i32, i32, i32, i32) {
    %c0_i32 = arith.constant 0 : i32
    %c0_i32_0 = arith.constant 0 : i32
    %c0_i32_1 = arith.constant 0 : i32
    return %arg0, %arg1, %c0_i32, %c0_i32_0 : i32, i32, i32, i32
  }
}

</mosaic_0001>

<llo_original>
// kernel: bottleneck_forward.1
$region0: #{bottleneck_forward.1}
  #allocation0 [shape = 'u32[]', space=smem, size = 0x4, offset = 0x4, fixed_abs, tag = 'smem constant byte address 0x4 - core index']
  #allocation1 [shape = 'u32[144,128]{1,0:T(1,128)}', space=vmem, size = 0x12000, scoped, tag = 'internal scratch']
  #allocation2 [shape = 'bf16[6,18,8]{2,1,0:T(8,128)(2,1)}', space=vmem, size = 0x9000, scoped, tag = 'scratch operand']
  #allocation3 [shape = 'bf16[4,16,72]{2,1,0:T(16,128)(2,1)}', space=vmem, size = 0x4000, scoped, tag = 'scratch operand']
  %s0 = inlined_call_operand.hbm [shape: f32[2,16,16,32], index: 0, kind: input, shape index: {}, may-alias: {0,1,2}]
  %s1 = inlined_call_operand.hbm [shape: f32[2,16,16,32], index: 1, kind: input, shape index: {}, may-alias: {0,1,2}]
  %s2 = inlined_call_operand.hbm [shape: f32[2,16,16,32], index: 2, kind: input, shape index: {}, may-alias: {0,1,2}]
  %s3 = inlined_call_operand.vmem [shape: bf16[32,8], index: 3, kind: input, shape index: {}]
  %s4 = inlined_call_operand.vmem [shape: f32[1,8], index: 4, kind: input, shape index: {}]
  %s5 = inlined_call_operand.vmem [shape: bf16[72,8], index: 5, kind: input, shape index: {}]
  %s6 = inlined_call_operand.vmem [shape: f32[1,8], index: 6, kind: input, shape index: {}]
  %s7 = inlined_call_operand.vmem [shape: bf16[8,32], index: 7, kind: input, shape index: {}]
  %s8 = inlined_call_operand.vmem [shape: f32[1,32], index: 8, kind: input, shape index: {}]
  %s9 = inlined_call_operand.hbm [shape: f32[2,16,16,32], index: 9, kind: output, shape index: {}]
  %s10 = sld [smem:[#allocation0]]
  $region89: #{bottleneck_forward.1} parent=0
    _
  %s12 = ssub.s32 1, %s10
  %s13 = scalar_select 0, %s12, %s10
  $region1: #{bottleneck_forward.1} parent=0
    #allocation4 [shape = 'u8[65536]{0}', space=vmem, size = 0x10000, scoped, tag = 'input window, operand 0']
    #allocation5 [shape = 's32[2]{0}', space=sflag, size = 0x8, scoped, tag = 'scoped memory for bottleneck_forward.1']
    #allocation6 [shape = 's32[2]{0}', space=sflag, size = 0x8, scoped, tag = 'scoped memory for bottleneck_forward.1']
    #allocation7 [shape = 'u8[16384]{0}', space=vmem, size = 0x4000, scoped, tag = 'input window, operand 1']
    #allocation8 [shape = 's32[2]{0}', space=sflag, size = 0x8, scoped, tag = 'scoped memory for bottleneck_forward.1']
    #allocation9 [shape = 'u8[16384]{0}', space=vmem, size = 0x4000, scoped, tag = 'input window, operand 2']
    #allocation10 [shape = 'u8[65536]{0}', space=vmem, size = 0x10000, scoped, tag = 'output window, operand 0']
    %14 = vsyncpa [#allocation5], 0
    %s15 = scalar_lea.sflag [#allocation5], 1
    %16 = vsyncpa %s15, 0
    %17 = vsyncpa [#allocation8], 0
    %s18 = scalar_lea.sflag [#allocation8], 1
    %19 = vsyncpa %s18, 0
    %20 = vsyncpa [#allocation6], 0
    %s21 = scalar_lea.sflag [#allocation6], 1
    %22 = vsyncpa %s21, 0
    loop: start=0, step=1, limit=10
    $region2: #{bottleneck_forward.1} parent=1 // loop_pre_header
      _
    $region3: #{bottleneck_forward.1} parent=1 // loop_header
      %s24 = sphi 0, %s28
      %p25 = scmp.ge.s32.totalorder %s24, 10
      %s31 = sphi 0, %s43
      %s32 = sphi 0, %s39
      %s33 = sphi 0, %s31
      %s34 = sphi 0, %s32
      %s35 = sphi 0, %s33
      %s36 = sphi 0, %s34
      %s48 = sphi 0, %s50
      %s51 = sphi 0, %s48
      %s52 = sphi 0, %s51
      %s68 = sphi 0, %s52
      %s84 = sphi 0, %s86
      %s87 = sphi 0, %s84
      %s88 = sphi 0, %s87
      %s104 = sphi 0, %s88
      %s120 = sphi 0, %s122
      %s123 = sphi 0, %s120
      %s124 = sphi 0, %s123
      %s140 = sphi 0, %s124
      %s144 = sphi 0, %s144
      %s146 = sphi 0, %s144
      %s147 = sphi 0, %s146
      %s161 = sphi 0, %s147
      %s165 = sphi 0, %s165
      %s167 = sphi 0, %s165
      %s168 = sphi 0, %s167
      %s182 = sphi 0, %s168
      %s186 = sphi 0, %s186
      %s188 = sphi 0, %s186
      %s189 = sphi 0, %s188
      %s203 = sphi 0, %s189
      %s207 = sphi 0, %s207
      %s209 = sphi 0, %s207
      %s210 = sphi 0, %s209
      %s224 = sphi 0, %s210
      %s228 = sphi 0, %s228
      %s230 = sphi 0, %s228
      %s231 = sphi 0, %s230
      %s245 = sphi 0, %s231
      %s249 = sphi 0, %s249
      %s251 = sphi 0, %s249
      %s252 = sphi 0, %s251
      %s266 = sphi 0, %s252
      %s274 = sphi 0, %s276
      %s277 = sphi 0, %s274
      %s278 = sphi 0, %s277
      %s294 = sphi 0, %s278
    $region4: #{bottleneck_forward.1} parent=1 // loop_header_branch
      %27 = sbr.rel (%p25) target = $region8
    $region5: #{bottleneck_forward.1} parent=1 // loop_body
      %s29 = ssub.s32 %s24, 1
      %s30 = ssub.s32 %s24, 2
      %s37 = sadd.s32 1, %s32
      %p38 = scmp.ge.s32.totalorder %s37, 4
      %s39 = scalar_select %p38, 0, %s37
      %s40 = sadd.s32 1, %s31
      %s41 = scalar_select %p38, %s40, %s31
      %p42 = scmp.ge.s32.totalorder %s41, 2
      %s43 = scalar_select %p42, 0, %s41
      %s44 = ssub.s32 %s31, %s43
      %s45 = ssub.s32 %s32, %s39
      %s46 = sor.u32 %s44, %s45
      %p47 = scmp.eq.s32.totalorder %s46, 0
      %s49 = sadd.s32 %s48, 1
      %s50 = scalar_select %p47, %s48, %s49
      %p53 = pneg %p47
      %p54 = scmp.eq.s32.totalorder %s24, 7
      %p55 = por %p53, %p54
      %p56 = scmp.ne.s32.totalorder %s48, %s51
      %p57 = scmp.eq.s32.totalorder %s24, 0
      %p58 = por %p56, %p57
      %p59 = scmp.ne.s32.totalorder %s48, %s51
      %p60 = scmp.eq.s32.totalorder %s29, 7
      %p61 = por %p59, %p60
      %p62 = scmp.ne.s32.totalorder %s51, %s52
      %p63 = scmp.eq.s32.totalorder %s29, 0
      %p64 = por %p62, %p63
      %p65 = scmp.ne.s32.totalorder %s51, %s52
      %p66 = scmp.eq.s32.totalorder %s30, 7
      %p67 = por %p65, %p66
      %p69 = scmp.ne.s32.totalorder %s52, %s68
      %p70 = scmp.eq.s32.totalorder %s30, 0
      %p71 = por %p69, %p70
      %s72 = smul.u32 %s32, 4
      %s73 = ssub.s32 %s72, 1
      %p74 = scmp.gt.s32.totalorder %s73, 0
      %s75 = scalar_select %p74, %s73, 0
      %s76 = smul.u32 %s39, 4
      %s77 = ssub.s32 %s76, 1
      %p78 = scmp.gt.s32.totalorder %s77, 0
      %s79 = scalar_select %p78, %s77, 0
      %s80 = ssub.s32 %s31, %s43
      %s81 = ssub.s32 %s75, %s79
      %s82 = sor.u32 %s80, %s81
      %p83 = scmp.eq.s32.totalorder %s82, 0
      %s85 = sadd.s32 %s84, 1
      %s86 = scalar_select %p83, %s84, %s85
      %p89 = pneg %p83
      %p90 = scmp.eq.s32.totalorder %s24, 7
      %p91 = por %p89, %p90
      %p92 = scmp.ne.s32.totalorder %s84, %s87
      %p93 = scmp.eq.s32.totalorder %s24, 0
      %p94 = por %p92, %p93
      %p95 = scmp.ne.s32.totalorder %s84, %s87
      %p96 = scmp.eq.s32.totalorder %s29, 7
      %p97 = por %p95, %p96
      %p98 = scmp.ne.s32.totalorder %s87, %s88
      %p99 = scmp.eq.s32.totalorder %s29, 0
      %p100 = por %p98, %p99
      %p101 = scmp.ne.s32.totalorder %s87, %s88
      %p102 = scmp.eq.s32.totalorder %s30, 7
      %p103 = por %p101, %p102
      %p105 = scmp.ne.s32.totalorder %s88, %s104
      %p106 = scmp.eq.s32.totalorder %s30, 0
      %p107 = por %p105, %p106
      %s108 = sadd.s32 %s32, 1
      %s109 = smul.u32 %s108, 4
      %p110 = scmp.lt.s32.totalorder %s109, 15
      %s111 = scalar_select %p110, %s109, 15
      %s112 = sadd.s32 %s39, 1
      %s113 = smul.u32 %s112, 4
      %p114 = scmp.lt.s32.totalorder %s113, 15
      %s115 = scalar_select %p114, %s113, 15
      %s116 = ssub.s32 %s31, %s43
      %s117 = ssub.s32 %s111, %s115
      %s118 = sor.u32 %s116, %s117
      %p119 = scmp.eq.s32.totalorder %s118, 0
      %s121 = sadd.s32 %s120, 1
      %s122 = scalar_select %p119, %s120, %s121
      %p125 = pneg %p119
      %p126 = scmp.eq.s32.totalorder %s24, 7
      %p127 = por %p125, %p126
      %p128 = scmp.ne.s32.totalorder %s120, %s123
      %p129 = scmp.eq.s32.totalorder %s24, 0
      %p130 = por %p128, %p129
      %p131 = scmp.ne.s32.totalorder %s120, %s123
      %p132 = scmp.eq.s32.totalorder %s29, 7
      %p133 = por %p131, %p132
      %p134 = scmp.ne.s32.totalorder %s123, %s124
      %p135 = scmp.eq.s32.totalorder %s29, 0
      %p136 = por %p134, %p135
      %p137 = scmp.ne.s32.totalorder %s123, %s124
      %p138 = scmp.eq.s32.totalorder %s30, 7
      %p139 = por %p137, %p138
      %p141 = scmp.ne.s32.totalorder %s124, %s140
      %p142 = scmp.eq.s32.totalorder %s30, 0
      %p143 = por %p141, %p142
      %s145 = sadd.s32 %s144, 1
      %p148 = scmp.eq.s32.totalorder %s24, 7
      %p149 = scmp.ne.s32.totalorder %s144, %s146
      %p150 = scmp.eq.s32.totalorder %s24, 0
      %p151 = por %p149, %p150
      %p152 = scmp.ne.s32.totalorder %s144, %s146
      %p153 = scmp.eq.s32.totalorder %s29, 7
      %p154 = por %p152, %p153
      %p155 = scmp.ne.s32.totalorder %s146, %s147
      %p156 = scmp.eq.s32.totalorder %s29, 0
      %p157 = por %p155, %p156
      %p158 = scmp.ne.s32.totalorder %s146, %s147
      %p159 = scmp.eq.s32.totalorder %s30, 7
      %p160 = por %p158, %p159
      %p162 = scmp.ne.s32.totalorder %s147, %s161
      %p163 = scmp.eq.s32.totalorder %s30, 0
      %p164 = por %p162, %p163
      %s166 = sadd.s32 %s165, 1
      %p169 = scmp.eq.s32.totalorder %s24, 7
      %p170 = scmp.ne.s32.totalorder %s165, %s167
      %p171 = scmp.eq.s32.totalorder %s24, 0
      %p172 = por %p170, %p171
      %p173 = scmp.ne.s32.totalorder %s165, %s167
      %p174 = scmp.eq.s32.totalorder %s29, 7
      %p175 = por %p173, %p174
      %p176 = scmp.ne.s32.totalorder %s167, %s168
      %p177 = scmp.eq.s32.totalorder %s29, 0
      %p178 = por %p176, %p177
      %p179 = scmp.ne.s32.totalorder %s167, %s168
      %p180 = scmp.eq.s32.totalorder %s30, 7
      %p181 = por %p179, %p180
      %p183 = scmp.ne.s32.totalorder %s168, %s182
      %p184 = scmp.eq.s32.totalorder %s30, 0
      %p185 = por %p183, %p184
      %s187 = sadd.s32 %s186, 1
      %p190 = scmp.eq.s32.totalorder %s24, 7
      %p191 = scmp.ne.s32.totalorder %s186, %s188
      %p192 = scmp.eq.s32.totalorder %s24, 0
      %p193 = por %p191, %p192
      %p194 = scmp.ne.s32.totalorder %s186, %s188
      %p195 = scmp.eq.s32.totalorder %s29, 7
      %p196 = por %p194, %p195
      %p197 = scmp.ne.s32.totalorder %s188, %s189
      %p198 = scmp.eq.s32.totalorder %s29, 0
      %p199 = por %p197, %p198
      %p200 = scmp.ne.s32.totalorder %s188, %s189
      %p201 = scmp.eq.s32.totalorder %s30, 7
      %p202 = por %p200, %p201
      %p204 = scmp.ne.s32.totalorder %s189, %s203
      %p205 = scmp.eq.s32.totalorder %s30, 0
      %p206 = por %p204, %p205
      %s208 = sadd.s32 %s207, 1
      %p211 = scmp.eq.s32.totalorder %s24, 7
      %p212 = scmp.ne.s32.totalorder %s207, %s209
      %p213 = scmp.eq.s32.totalorder %s24, 0
      %p214 = por %p212, %p213
      %p215 = scmp.ne.s32.totalorder %s207, %s209
      %p216 = scmp.eq.s32.totalorder %s29, 7
      %p217 = por %p215, %p216
      %p218 = scmp.ne.s32.totalorder %s209, %s210
      %p219 = scmp.eq.s32.totalorder %s29, 0
      %p220 = por %p218, %p219
      %p221 = scmp.ne.s32.totalorder %s209, %s210
      %p222 = scmp.eq.s32.totalorder %s30, 7
      %p223 = por %p221, %p222
      %p225 = scmp.ne.s32.totalorder %s210, %s224
      %p226 = scmp.eq.s32.totalorder %s30, 0
      %p227 = por %p225, %p226
      %s229 = sadd.s32 %s228, 1
      %p232 = scmp.eq.s32.totalorder %s24, 7
      %p233 = scmp.ne.s32.totalorder %s228, %s230
      %p234 = scmp.eq.s32.totalorder %s24, 0
      %p235 = por %p233, %p234
      %p236 = scmp.ne.s32.totalorder %s228, %s230
      %p237 = scmp.eq.s32.totalorder %s29, 7
      %p238 = por %p236, %p237
      %p239 = scmp.ne.s32.totalorder %s230, %s231
      %p240 = scmp.eq.s32.totalorder %s29, 0
      %p241 = por %p239, %p240
      %p242 = scmp.ne.s32.totalorder %s230, %s231
      %p243 = scmp.eq.s32.totalorder %s30, 7
      %p244 = por %p242, %p243
      %p246 = scmp.ne.s32.totalorder %s231, %s245
      %p247 = scmp.eq.s32.totalorder %s30, 0
      %p248 = por %p246, %p247
      %s250 = sadd.s32 %s249, 1
      %p253 = scmp.eq.s32.totalorder %s24, 7
      %p254 = scmp.ne.s32.totalorder %s249, %s251
      %p255 = scmp.eq.s32.totalorder %s24, 0
      %p256 = por %p254, %p255
      %p257 = scmp.ne.s32.totalorder %s249, %s251
      %p258 = scmp.eq.s32.totalorder %s29, 7
      %p259 = por %p257, %p258
      %p260 = scmp.ne.s32.totalorder %s251, %s252
      %p261 = scmp.eq.s32.totalorder %s29, 0
      %p262 = por %p260, %p261
      %p263 = scmp.ne.s32.totalorder %s251, %s252
      %p264 = scmp.eq.s32.totalorder %s30, 7
      %p265 = por %p263, %p264
      %p267 = scmp.ne.s32.totalorder %s252, %s266
      %p268 = scmp.eq.s32.totalorder %s30, 0
      %p269 = por %p267, %p268
      %s270 = ssub.s32 %s31, %s43
      %s271 = ssub.s32 %s32, %s39
      %s272 = sor.u32 %s270, %s271
      %p273 = scmp.eq.s32.totalorder %s272, 0
      %s275 = sadd.s32 %s274, 1
      %s276 = scalar_select %p273, %s274, %s275
      %p279 = pneg %p273
      %p280 = scmp.eq.s32.totalorder %s24, 7
      %p281 = por %p279, %p280
      %p282 = scmp.ne.s32.totalorder %s274, %s277
      %p283 = scmp.eq.s32.totalorder %s24, 0
      %p284 = por %p282, %p283
      %p285 = scmp.ne.s32.totalorder %s274, %s277
      %p286 = scmp.eq.s32.totalorder %s29, 7
      %p287 = por %p285, %p286
      %p288 = scmp.ne.s32.totalorder %s277, %s278
      %p289 = scmp.eq.s32.totalorder %s29, 0
      %p290 = por %p288, %p289
      %p291 = scmp.ne.s32.totalorder %s277, %s278
      %p292 = scmp.eq.s32.totalorder %s30, 7
      %p293 = por %p291, %p292
      %p295 = scmp.ne.s32.totalorder %s278, %s294
      %p296 = scmp.eq.s32.totalorder %s30, 0
      %p297 = por %p295, %p296
      %p298 = scmp.le.s32.totalorder 1, %s24
      %p299 = scmp.lt.s32.totalorder %s24, 9
      %p300 = pnand %p298, %p299
      %p301 = pneg %p300
      // Predicated region
      $region9: #{bottleneck_forward.1} parent=5 // pred_check
        _
      $region10: #{bottleneck_forward.1} parent=5 // pred_check_branch
        %303 = sbr.rel (%p300) target = $region12
      $region11: #{bottleneck_forward.1} parent=5 // pred_region
        %s304 = ssub.s32 %s24, 1
        // Predicated region
        $region13: #{bottleneck_forward.1} parent=11 // pred_check
          %p305 = pneg %p157
        $region14: #{bottleneck_forward.1} parent=11 // pred_check_branch
          %307 = sbr.rel (%p305) target = $region16
        $region15: #{bottleneck_forward.1} parent=11 // pred_region
          _
        $region16: #{bottleneck_forward.1} parent=11 // pred_fallthru
          _
        // Predicated region
        $region17: #{bottleneck_forward.1} parent=11 // pred_check
          %p308 = pneg %p178
        $region18: #{bottleneck_forward.1} parent=11 // pred_check_branch
          %310 = sbr.rel (%p308) target = $region20
        $region19: #{bottleneck_forward.1} parent=11 // pred_region
          _
        $region20: #{bottleneck_forward.1} parent=11 // pred_fallthru
          _
        // Predicated region
        $region21: #{bottleneck_forward.1} parent=11 // pred_check
          %p311 = pneg %p199
        $region22: #{bottleneck_forward.1} parent=11 // pred_check_branch
          %313 = sbr.rel (%p311) target = $region24
        $region23: #{bottleneck_forward.1} parent=11 // pred_region
          _
        $region24: #{bottleneck_forward.1} parent=11 // pred_fallthru
          _
        // Predicated region
        $region25: #{bottleneck_forward.1} parent=11 // pred_check
          %p314 = pneg %p220
        $region26: #{bottleneck_forward.1} parent=11 // pred_check_branch
          %316 = sbr.rel (%p314) target = $region28
        $region27: #{bottleneck_forward.1} parent=11 // pred_region
          _
        $region28: #{bottleneck_forward.1} parent=11 // pred_fallthru
          _
        // Predicated region
        $region29: #{bottleneck_forward.1} parent=11 // pred_check
          %p317 = pneg %p241
        $region30: #{bottleneck_forward.1} parent=11 // pred_check_branch
          %319 = sbr.rel (%p317) target = $region32
        $region31: #{bottleneck_forward.1} parent=11 // pred_region
          _
        $region32: #{bottleneck_forward.1} parent=11 // pred_fallthru
          _
        // Predicated region
        $region33: #{bottleneck_forward.1} parent=11 // pred_check
          %p320 = pneg %p262
        $region34: #{bottleneck_forward.1} parent=11 // pred_check_branch
          %322 = sbr.rel (%p320) target = $region36
        $region35: #{bottleneck_forward.1} parent=11 // pred_region
          _
        $region36: #{bottleneck_forward.1} parent=11 // pred_fallthru
          _
      $region12: #{bottleneck_forward.1} parent=5 // pred_fallthru
        _
      %p323 = scmp.lt.s32.totalorder %s24, 8
      // Predicated region
      $region37: #{bottleneck_forward.1} parent=5 // pred_check
        %p324 = pneg %p323
      $region38: #{bottleneck_forward.1} parent=5 // pred_check_branch
        %326 = sbr.rel (%p324) target = $region40
      $region39: #{bottleneck_forward.1} parent=5 // pred_region
        // Predicated region
        $region41: #{bottleneck_forward.1} parent=39 // pred_check
          %p327 = pneg %p58
        $region42: #{bottleneck_forward.1} parent=39 // pred_check_branch
          %329 = sbr.rel (%p327) target = $region44
        $region43: #{bottleneck_forward.1} parent=39 // pred_region
          %s330 = sand.u32 %s48, 1
          %s331 = scalar_lea.sflag [#allocation5], %s330
          %s332 = sand.u32 %s48, 1
          %s333 = smul.addr %s332, 64
          %s334 = scalar_lea.vmem [#allocation4], %s333
          %s335 = smul.u32 4, %s32
          %s337 = ssub.s32 1024, 1024
          %338 = vsyncadd %s331, %s337
          %s339 = smul.addr %s335, 2
          %s340 = smul.addr %s31, 32
          %s341 = sadd.s32 %s339, %s340
          %s342 = smul.addr %s341, 128
          %s343 = scalar_lea.hbm %s0, %s342
          %s344 = sshll.u32 %s334, 4
          %s345 = int_to_ptr.vmem [resolvable:$true] %s344
          %350 = dma.hbm_to_vmem [thread:$0]  %s343, 1024, %s345, %s331, 128, 128, 8
        $region44: #{bottleneck_forward.1} parent=39 // pred_fallthru
          _
        // Predicated region
        $region45: #{bottleneck_forward.1} parent=39 // pred_check
          %p351 = pneg %p94
        $region46: #{bottleneck_forward.1} parent=39 // pred_check_branch
          %353 = sbr.rel (%p351) target = $region48
        $region47: #{bottleneck_forward.1} parent=39 // pred_region
          %s354 = sand.u32 %s24, 1
          %s355 = scalar_lea.sflag [#allocation8], %s354
          %s356 = sand.u32 %s84, 1
          %s357 = smul.addr %s356, 16
          %s358 = scalar_lea.vmem [#allocation7], %s357
          %s359 = smul.u32 %s32, 4
          %s360 = ssub.s32 %s359, 1
          %p361 = scmp.gt.s32.totalorder %s360, 0
          %s362 = scalar_select %p361, %s360, 0
          %s364 = ssub.s32 256, 256
          %365 = vsyncadd %s355, %s364
          %s366 = smul.addr %s362, 2
          %s367 = smul.addr %s31, 32
          %s368 = sadd.s32 %s366, %s367
          %s369 = smul.addr %s368, 128
          %s370 = scalar_lea.hbm %s1, %s369
          %s371 = sshll.u32 %s358, 4
          %s372 = int_to_ptr.vmem [resolvable:$true] %s371
          %377 = dma.hbm_to_vmem [thread:$0]  %s370, 256, %s372, %s355, 128, 128, 8
        $region48: #{bottleneck_forward.1} parent=39 // pred_fallthru
          _
        // Predicated region
        $region49: #{bottleneck_forward.1} parent=39 // pred_check
          %p378 = pneg %p130
        $region50: #{bottleneck_forward.1} parent=39 // pred_check_branch
          %380 = sbr.rel (%p378) target = $region52
        $region51: #{bottleneck_forward.1} parent=39 // pred_region
          %s381 = sand.u32 %s24, 1
          %s382 = scalar_lea.sflag [#allocation8], %s381
          %s383 = sand.u32 %s120, 1
          %s384 = smul.addr %s383, 16
          %s385 = scalar_lea.vmem [#allocation9], %s384
          %s386 = sadd.s32 %s32, 1
          %s387 = smul.u32 %s386, 4
          %p388 = scmp.lt.s32.totalorder %s387, 15
          %s389 = scalar_select %p388, %s387, 15
          %s391 = ssub.s32 256, 256
          %392 = vsyncadd %s382, %s391
          %s393 = smul.addr %s389, 2
          %s394 = smul.addr %s31, 32
          %s395 = sadd.s32 %s393, %s394
          %s396 = smul.addr %s395, 128
          %s397 = scalar_lea.hbm %s2, %s396
          %s398 = sshll.u32 %s385, 4
          %s399 = int_to_ptr.vmem [resolvable:$true] %s398
          %404 = dma.hbm_to_vmem [thread:$0]  %s397, 256, %s399, %s382, 128, 128, 8
        $region52: #{bottleneck_forward.1} parent=39 // pred_fallthru
          _
      $region40: #{bottleneck_forward.1} parent=5 // pred_fallthru
        _
      %p405 = scmp.le.s32.totalorder 1, %s24
      %p406 = scmp.lt.s32.totalorder %s24, 9
      %p407 = pnand %p405, %p406
      %p408 = pneg %p407
      // Predicated region
      $region53: #{bottleneck_forward.1} parent=5 // pred_check
        _
      $region54: #{bottleneck_forward.1} parent=5 // pred_check_branch
        %410 = sbr.rel (%p407) target = $region56
      $region55: #{bottleneck_forward.1} parent=5 // pred_region
        %s411 = ssub.s32 %s24, 1
        %s412 = sand.u32 %s51, 1
        %s413 = scalar_lea.sflag [#allocation5], %s412
        %s414 = sand.u32 %s51, 1
        %s415 = smul.addr %s414, 64
        %s416 = scalar_lea.vmem [#allocation4], %s415
        // Predicated region
        $region57: #{bottleneck_forward.1} parent=55 // pred_check
          %p417 = pneg %p64
        $region58: #{bottleneck_forward.1} parent=55 // pred_check_branch
          %419 = sbr.rel (%p417) target = $region60
        $region59: #{bottleneck_forward.1} parent=55 // pred_region
          %420 = dma.done %s413, 1024
        $region60: #{bottleneck_forward.1} parent=55 // pred_fallthru
          _
        %s421 = sand.u32 %s29, 1
        %s422 = scalar_lea.sflag [#allocation8], %s421
        %s423 = sand.u32 %s87, 1
        %s424 = smul.addr %s423, 16
        %s425 = scalar_lea.vmem [#allocation7], %s424
        // Predicated region
        $region61: #{bottleneck_forward.1} parent=55 // pred_check
          %p426 = pneg %p100
        $region62: #{bottleneck_forward.1} parent=55 // pred_check_branch
          %428 = sbr.rel (%p426) target = $region64
        $region63: #{bottleneck_forward.1} parent=55 // pred_region
          %429 = dma.done %s422, 256
        $region64: #{bottleneck_forward.1} parent=55 // pred_fallthru
          _
        %s430 = sand.u32 %s29, 1
        %s431 = scalar_lea.sflag [#allocation8], %s430
        %s432 = sand.u32 %s123, 1
        %s433 = smul.addr %s432, 16
        %s434 = scalar_lea.vmem [#allocation9], %s433
        // Predicated region
        $region65: #{bottleneck_forward.1} parent=55 // pred_check
          %p435 = pneg %p136
        $region66: #{bottleneck_forward.1} parent=55 // pred_check_branch
          %437 = sbr.rel (%p435) target = $region68
        $region67: #{bottleneck_forward.1} parent=55 // pred_region
          %438 = dma.done %s431, 256
        $region68: #{bottleneck_forward.1} parent=55 // pred_fallthru
          _
        %s439 = sand.u32 %s51, 1
        %s440 = scalar_lea.sflag [#allocation5], %s439
        %s441 = sand.u32 %s51, 1
        %s442 = smul.addr %s441, 64
        %s443 = scalar_lea.vmem [#allocation4], %s442
        %p444 = pneg %p64
        %p445 = pneg %p61
        %s446 = sand.u32 %s29, 1
        %s447 = scalar_lea.sflag [#allocation8], %s446
        %s448 = sand.u32 %s87, 1
        %s449 = smul.addr %s448, 16
        %s450 = scalar_lea.vmem [#allocation7], %s449
        %p451 = pneg %p100
        %p452 = pneg %p97
        %s453 = sand.u32 %s29, 1
        %s454 = scalar_lea.sflag [#allocation8], %s453
        %s455 = sand.u32 %s123, 1
        %s456 = smul.addr %s455, 16
        %s457 = scalar_lea.vmem [#allocation9], %s456
        %p458 = pneg %p136
        %p459 = pneg %p133
        %p460 = pneg %p157
        %p461 = pneg %p154
        %p462 = pneg %p178
        %p463 = pneg %p175
        %p464 = pneg %p199
        %p465 = pneg %p196
        %p466 = pneg %p220
        %p467 = pneg %p217
        %p468 = pneg %p241
        %p469 = pneg %p238
        %p470 = pneg %p262
        %p471 = pneg %p259
        %p472 = pneg %p290
        %p473 = pneg %p287
        %s474 = sand.u32 %s277, 1
        %s475 = scalar_lea.sflag [#allocation6], %s474
        %s476 = sand.u32 %s277, 1
        %s477 = smul.addr %s476, 64
        %s478 = scalar_lea.vmem [#allocation10], %s477
        %s479 = smul.u32 4, %s34
        %s480 = smul.u32 %s34, 4
        %s481 = ssub.s32 %s480, 1
        %p482 = scmp.gt.s32.totalorder %s481, 0
        %s483 = scalar_select %p482, %s481, 0
        %s484 = sadd.s32 %s34, 1
        %s485 = smul.u32 %s484, 4
        %p486 = scmp.lt.s32.totalorder %s485, 15
        %s487 = scalar_select %p486, %s485, 15
        %s488 = smul.u32 4, %s34
        %vm490 = vcmask 57344
        %vm491 = vsmask.f32 256
        %vm492 = vmand %vm490, %vm491
        %v493 = vld [vmem:[#allocation2] sm:$0x1]
        %v494 = vsel %vm492, 0, %v493
        %495 = vst [vmem:[#allocation2] sm:$0x1] %v494
        %v496 = vld [vmem:[#allocation2 + $0xc] sm:$0x1]
        %v497 = vsel %vm492, 0, %v496
        %498 = vst [vmem:[#allocation2 + $0xc] sm:$0x1] %v497
        %v499 = vld [vmem:[#allocation2 + $0x18] sm:$0x1]
        %v500 = vsel %vm492, 0, %v499
        %501 = vst [vmem:[#allocation2 + $0x18] sm:$0x1] %v500
        %v502 = vld [vmem:[#allocation2 + $0x24] sm:$0x1]
        %v503 = vsel %vm492, 0, %v502
        %504 = vst [vmem:[#allocation2 + $0x24] sm:$0x1] %v503
        %v505 = vld [vmem:[#allocation2 + $0x30] sm:$0x1]
        %v506 = vsel %vm492, 0, %v505
        %507 = vst [vmem:[#allocation2 + $0x30] sm:$0x1] %v506
        %v508 = vld [vmem:[#allocation2 + $0x3c] sm:$0x1]
        %v509 = vsel %vm492, 0, %v508
        %510 = vst [vmem:[#allocation2 + $0x3c] sm:$0x1] %v509
        %vm511 = vsmask.f32 7938
        %vm512 = vmand %vm490, %vm511
        %v513 = vld [vmem:[#allocation2 + $0x8] sm:$0x1]
        %v514 = vsel %vm512, 0, %v513
        %515 = vst [vmem:[#allocation2 + $0x8] sm:$0x1] %v514
        %v516 = vld [vmem:[#allocation2 + $0x14] sm:$0x1]
        %v517 = vsel %vm512, 0, %v516
        %518 = vst [vmem:[#allocation2 + $0x14] sm:$0x1] %v517
        %v519 = vld [vmem:[#allocation2 + $0x20] sm:$0x1]
        %v520 = vsel %vm512, 0, %v519
        %521 = vst [vmem:[#allocation2 + $0x20] sm:$0x1] %v520
        %v522 = vld [vmem:[#allocation2 + $0x2c] sm:$0x1]
        %v523 = vsel %vm512, 0, %v522
        %524 = vst [vmem:[#allocation2 + $0x2c] sm:$0x1] %v523
        %v525 = vld [vmem:[#allocation2 + $0x38] sm:$0x1]
        %v526 = vsel %vm512, 0, %v525
        %527 = vst [vmem:[#allocation2 + $0x38] sm:$0x1] %v526
        %v528 = vld [vmem:[#allocation2 + $0x44] sm:$0x1]
        %v529 = vsel %vm512, 0, %v528
        %530 = vst [vmem:[#allocation2 + $0x44] sm:$0x1] %v529
        %v531 = vld [vmem:[%s416] sm:$0xff]
        %v532 = vld [vmem:[%s416 + $0x8] sm:$0xff]
        %v533 = vld [vmem:[%s416 + $0x10] sm:$0xff]
        %v534 = vld [vmem:[%s416 + $0x18] sm:$0xff]
        %v535 = vld [vmem:[%s416 + $0x20] sm:$0xff]
        %v536 = vld [vmem:[%s416 + $0x28] sm:$0xff]
        %v537 = vld [vmem:[%s416 + $0x30] sm:$0xff]
        %v538 = vld [vmem:[%s416 + $0x38] sm:$0xff]
        %v539 = vpack.c.bf16 %v532, %v531
        %v540 = vpack.c.bf16 %v534, %v533
        %v541 = vpack.c.bf16 %v536, %v535
        %v542 = vpack.c.bf16 %v538, %v537
        %v543 = vld [vmem:[%s3] sm:$0xf]
        %v544 = vld [vmem:[%s3 + $0x4] sm:$0xf]
        %v545 = vld [vmem:[%s3 + $0x8] sm:$0xf]
        %v546 = vld [vmem:[%s3 + $0xc] sm:$0xf]
        %v547 = vld [vmem:[%s4] sm:$0x1]
        %v549 = vlaneseq
        %v550 = vshrl.u32 %v549, 7
        %v551 = vsub.s32 0, %v550
        %v552 = vrot.slane %v547, %v551
        %v558 = vunpack.c.l.b16 %v543
        %v559 = vunpack.c.l.b16 %v544
        %v560 = vunpack.c.l.b16 %v545
        %v561 = vunpack.c.l.b16 %v546
        %v562 = vpack.c.b16 %v559, %v558
        %v563 = vpack.c.b16 %v561, %v560
        %vm566 = vcmask 261120
        %v568 = vsel %vm566, %v539, 0
        %v571 = vsel %vm566, %v540, 0
        %v574 = vsel %vm566, %v541, 0
        %v577 = vsel %vm566, %v542, 0
        %579 = vmatprep.subr.bf16.mxu0 0
        %580 = vmatpush1.bf16.msra.mxu0 %v562
        %581 = vmatprep.subr.bf16.mxu0 0
        %582 = vmatpush1.bf16.msra.mxu0 %v563
        %583 = vmatprep.subr.bf16.mxu0 0
        %584 = vmatpush1.bf16.msra.mxu0 0
        %585 = vmatprep.subr.bf16.mxu0 0
        %586 = vmatpush1.bf16.msra.mxu0 0
        %587 = vmatprep.subr.bf16.mxu0 0
        %588 = vmatpush1.bf16.msra.mxu0 0
        %589 = vmatprep.subr.bf16.mxu0 0
        %590 = vmatpush1.bf16.msra.mxu0 0
        %591 = vmatprep.subr.bf16.mxu0 0
        %592 = vmatpush1.bf16.msra.mxu0 0
        %593 = vmatprep.subr.bf16.mxu0 0
        %594 = vmatpush1.bf16.msra.mxu0 0
        %595 = vmatprep.subr.bf16.mxu0 0
        %596 = vmatpush1.bf16.msra.mxu0 0
        %597 = vmatprep.subr.bf16.mxu0 0
        %598 = vmatpush1.bf16.msra.mxu0 0
        %599 = vmatprep.subr.bf16.mxu0 0
        %600 = vmatpush1.bf16.msra.mxu0 0
        %601 = vmatprep.subr.bf16.mxu0 0
        %602 = vmatpush1.bf16.msra.mxu0 0
        %603 = vmatprep.subr.bf16.mxu0 0
        %604 = vmatpush1.bf16.msra.mxu0 0
        %605 = vmatprep.subr.bf16.mxu0 0
        %606 = vmatpush1.bf16.msra.mxu0 0
        %607 = vmatprep.subr.bf16.mxu0 0
        %608 = vmatpush1.bf16.msra.mxu0 0
        %609 = vmatprep.subr.bf16.mxu0 0
        %610 = vmatpush1.bf16.msra.mxu0 0
        %611 = vmatprep.mubr.bf16.mxu0 0
        %612 = vmatmul.mubr.bf16.gmra.mrb[0].mxu0 %v568
        %v613 = vpop.f32.mrb[0].mxu0
        %v614 = vadd.f32 %v552, %v613
        %v615 = vpop.f32.mrb[0].mxu0
        %v616 = vpop.f32.mrb[0].mxu0
        %v617 = vadd.f32 %v552, %v616
        %v618 = vpop.f32.mrb[0].mxu0
        %619 = vmatprep.mubr.bf16.mxu0 0
        %620 = vmatmul.mubr.bf16.gmra.mrb[0].mxu0 %v571
        %v621 = vpop.f32.mrb[0].mxu0
        %v622 = vadd.f32 %v552, %v621
        %v623 = vpop.f32.mrb[0].mxu0
        %v624 = vpop.f32.mrb[0].mxu0
        %v625 = vadd.f32 %v552, %v624
        %v626 = vpop.f32.mrb[0].mxu0
        %627 = vmatprep.mubr.bf16.mxu0 0
        %628 = vmatmul.mubr.bf16.gmra.mrb[0].mxu0 %v574
        %v629 = vpop.f32.mrb[0].mxu0
        %v630 = vadd.f32 %v552, %v629
        %v631 = vpop.f32.mrb[0].mxu0
        %v632 = vpop.f32.mrb[0].mxu0
        %v633 = vadd.f32 %v552, %v632
        %v634 = vpop.f32.mrb[0].mxu0
        %635 = vmatprep.mubr.bf16.mxu0 0
        %636 = vmatmul.mubr.bf16.gmra.mrb[0].mxu0 %v577
        %v637 = vpop.f32.mrb[0].mxu0
        %v638 = vadd.f32 %v552, %v637
        %v639 = vpop.f32.mrb[0].mxu0
        %v640 = vpop.f32.mrb[0].mxu0
        %v641 = vadd.f32 %v552, %v640
        %v642 = vpop.f32.mrb[0].mxu0
        %643 = vdwg.mxu0
        %v644 = vmax.f32 %v614, 0.0
        %v645 = vmax.f32 %v617, 0.0
        %v646 = vmax.f32 %v622, 0.0
        %v647 = vmax.f32 %v625, 0.0
        %v648 = vmax.f32 %v630, 0.0
        %v649 = vmax.f32 %v633, 0.0
        %v650 = vmax.f32 %v638, 0.0
        %v651 = vmax.f32 %v641, 0.0
        %v652 = vpack.c.bf16 %v645, %v644
        %v653 = vpack.c.bf16 %v647, %v646
        %v654 = vpack.c.bf16 %v649, %v648
        %v655 = vpack.c.bf16 %v651, %v650
        %v660 = vunpack.c.l.b16 %v652
        %v661 = vunpack.c.h.b16 %v652
        %v662 = vunpack.c.l.b16 %v653
        %v663 = vunpack.c.h.b16 %v653
        %v664 = vunpack.c.l.b16 %v654
        %v665 = vunpack.c.h.b16 %v654
        %v666 = vunpack.c.l.b16 %v655
        %v667 = vunpack.c.h.b16 %v655
        %v668 = vpack.c.b16 %v660, %v660
        %v669 = vpack.c.b16 %v661, %v661
        %v670 = vpack.c.b16 %v662, %v662
        %v671 = vpack.c.b16 %v663, %v663
        %v672 = vpack.c.b16 %v664, %v664
        %v673 = vpack.c.b16 %v665, %v665
        %v674 = vpack.c.b16 %v666, %v666
        %v675 = vpack.c.b16 %v667, %v667
        %vm676 = vsmask.f32 4368
        %vm677 = vmor %vm491, %vm676
        %v679 = vshrl.u32 %v668, 16
        %v681 = vrot.slane %v679, 7
        %v682 = vshll.u32 %v668, 16
        %v684 = vor.u32 %v681, %v682
        %v685 = vrot.slane %v681, 4
        %v687 = vshrl.u32 %v669, 16
        %v689 = vrot.slane %v687, 7
        %v690 = vshll.u32 %v669, 16
        %v692 = vor.u32 %v689, %v690
        %v693 = vsel %vm677, %v685, %v692
        %v694 = vrot.slane %v689, 4
        %v696 = vshrl.u32 %v670, 16
        %v698 = vrot.slane %v696, 7
        %v699 = vshll.u32 %v670, 16
        %v701 = vor.u32 %v698, %v699
        %v702 = vrot.slane %v698, 4
        %v704 = vshrl.u32 %v671, 16
        %v706 = vrot.slane %v704, 7
        %v707 = vshll.u32 %v671, 16
        %v709 = vor.u32 %v706, %v707
        %v710 = vsel %vm677, %v702, %v709
        %v711 = vrot.slane %v706, 4
        %v713 = vshrl.u32 %v672, 16
        %v715 = vrot.slane %v713, 7
        %v716 = vshll.u32 %v672, 16
        %v718 = vor.u32 %v715, %v716
        %v719 = vrot.slane %v715, 4
        %v721 = vshrl.u32 %v673, 16
        %v723 = vrot.slane %v721, 7
        %v724 = vshll.u32 %v673, 16
        %v726 = vor.u32 %v723, %v724
        %v727 = vsel %vm677, %v719, %v726
        %v728 = vrot.slane %v723, 4
        %v730 = vshrl.u32 %v674, 16
        %v732 = vrot.slane %v730, 7
        %v733 = vshll.u32 %v674, 16
        %v735 = vor.u32 %v732, %v733
        %v736 = vrot.slane %v732, 4
        %v738 = vshrl.u32 %v675, 16
        %v740 = vrot.slane %v738, 7
        %v741 = vshll.u32 %v675, 16
        %v743 = vor.u32 %v740, %v741
        %v744 = vsel %vm677, %v736, %v743
        %v745 = vrot.slane %v740, 4
        %s758 = scalar_lea.vmem [#allocation2], 12
        %vm759 = vcmask 60416
        %vm760 = vmand %vm759, %vm511
        %v761 = vld [vmem:[%s758] sm:$0xf]
        %v762 = vsel %vm760, %v684, %v761
        %763 = vst [vmem:[%s758] sm:$0xf] %v762
        %vm764 = vcmask 60416
        %765 = vst.msk [vmem:[%s758 + $0x4] sm:$0xf] %vm764, %v693
        %v766 = vld [vmem:[%s758 + $0x8] sm:$0x1]
        %v767 = vsel %vm492, %v694, %v766
        %768 = vst [vmem:[%s758 + $0x8] sm:$0x1] %v767
        %v769 = vld [vmem:[%s758 + $0xc] sm:$0xf]
        %v770 = vsel %vm760, %v701, %v769
        %771 = vst [vmem:[%s758 + $0xc] sm:$0xf] %v770
        %772 = vst.msk [vmem:[%s758 + $0x10] sm:$0xf] %vm764, %v710
        %v773 = vld [vmem:[%s758 + $0x14] sm:$0x1]
        %v774 = vsel %vm492, %v711, %v773
        %775 = vst [vmem:[%s758 + $0x14] sm:$0x1] %v774
        %v776 = vld [vmem:[%s758 + $0x18] sm:$0xf]
        %v777 = vsel %vm760, %v718, %v776
        %778 = vst [vmem:[%s758 + $0x18] sm:$0xf] %v777
        %779 = vst.msk [vmem:[%s758 + $0x1c] sm:$0xf] %vm764, %v727
        %v780 = vld [vmem:[%s758 + $0x20] sm:$0x1]
        %v781 = vsel %vm492, %v728, %v780
        %782 = vst [vmem:[%s758 + $0x20] sm:$0x1] %v781
        %v783 = vld [vmem:[%s758 + $0x24] sm:$0xf]
        %v784 = vsel %vm760, %v735, %v783
        %785 = vst [vmem:[%s758 + $0x24] sm:$0xf] %v784
        %786 = vst.msk [vmem:[%s758 + $0x28] sm:$0xf] %vm764, %v744
        %v787 = vld [vmem:[%s758 + $0x2c] sm:$0x1]
        %v788 = vsel %vm492, %v745, %v787
        %789 = vst [vmem:[%s758 + $0x2c] sm:$0x1] %v788
        %v790 = vld [vmem:[%s425] sm:$0xff]
        %v791 = vld [vmem:[%s425 + $0x8] sm:$0xff]
        %v792 = vpack.c.bf16 %v791, %v790
        %v793 = vld [vmem:[%s3] sm:$0xf]
        %v794 = vld [vmem:[%s3 + $0x4] sm:$0xf]
        %v795 = vld [vmem:[%s3 + $0x8] sm:$0xf]
        %v796 = vld [vmem:[%s3 + $0xc] sm:$0xf]
        %v797 = vld [vmem:[%s4] sm:$0x1]
        %v799 = vlaneseq
        %v800 = vshrl.u32 %v799, 7
        %v801 = vsub.s32 0, %v800
        %v802 = vrot.slane %v797, %v801
        %v808 = vunpack.c.l.b16 %v793
        %v809 = vunpack.c.l.b16 %v794
        %v810 = vunpack.c.l.b16 %v795
        %v811 = vunpack.c.l.b16 %v796
        %v812 = vpack.c.b16 %v809, %v808
        %v813 = vpack.c.b16 %v811, %v810
        %v817 = vsel %vm566, %v792, 0
        %819 = vmatprep.subr.bf16.mxu0 0
        %820 = vmatpush1.bf16.msra.mxu0 %v812
        %821 = vmatprep.subr.bf16.mxu0 0
        %822 = vmatpush1.bf16.msra.mxu0 %v813
        %823 = vmatprep.subr.bf16.mxu0 0
        %824 = vmatpush1.bf16.msra.mxu0 0
        %825 = vmatprep.subr.bf16.mxu0 0
        %826 = vmatpush1.bf16.msra.mxu0 0
        %827 = vmatprep.subr.bf16.mxu0 0
        %828 = vmatpush1.bf16.msra.mxu0 0
        %829 = vmatprep.subr.bf16.mxu0 0
        %830 = vmatpush1.bf16.msra.mxu0 0
        %831 = vmatprep.subr.bf16.mxu0 0
        %832 = vmatpush1.bf16.msra.mxu0 0
        %833 = vmatprep.subr.bf16.mxu0 0
        %834 = vmatpush1.bf16.msra.mxu0 0
        %835 = vmatprep.subr.bf16.mxu0 0
        %836 = vmatpush1.bf16.msra.mxu0 0
        %837 = vmatprep.subr.bf16.mxu0 0
        %838 = vmatpush1.bf16.msra.mxu0 0
        %839 = vmatprep.subr.bf16.mxu0 0
        %840 = vmatpush1.bf16.msra.mxu0 0
        %841 = vmatprep.subr.bf16.mxu0 0
        %842 = vmatpush1.bf16.msra.mxu0 0
        %843 = vmatprep.subr.bf16.mxu0 0
        %844 = vmatpush1.bf16.msra.mxu0 0
        %845 = vmatprep.subr.bf16.mxu0 0
        %846 = vmatpush1.bf16.msra.mxu0 0
        %847 = vmatprep.subr.bf16.mxu0 0
        %848 = vmatpush1.bf16.msra.mxu0 0
        %849 = vmatprep.subr.bf16.mxu0 0
        %850 = vmatpush1.bf16.msra.mxu0 0
        %851 = vmatprep.mubr.bf16.mxu0 0
        %852 = vmatmul.mubr.bf16.gmra.mrb[0].mxu0 %v817
        %v853 = vpop.f32.mrb[0].mxu0
        %v854 = vadd.f32 %v802, %v853
        %v855 = vpop.f32.mrb[0].mxu0
        %v856 = vpop.f32.mrb[0].mxu0
        %v857 = vadd.f32 %v802, %v856
        %v858 = vpop.f32.mrb[0].mxu0
        %859 = vdwg.mxu0
        %v860 = vmax.f32 %v854, 0.0
        %v861 = vmax.f32 %v857, 0.0
        %v862 = vpack.c.bf16 %v861, %v860
        %v864 = vunpack.c.l.b16 %v862
        %v865 = vunpack.c.h.b16 %v862
        %v866 = vpack.c.b16 %v864, %v864
        %v867 = vpack.c.b16 %v865, %v865
        %v869 = vshrl.u32 %v866, 16
        %v871 = vrot.slane %v869, 7
        %v872 = vshll.u32 %v866, 16
        %v874 = vor.u32 %v871, %v872
        %v875 = vrot.slane %v871, 4
        %v877 = vshrl.u32 %v867, 16
        %v879 = vrot.slane %v877, 7
        %v880 = vshll.u32 %v867, 16
        %v882 = vor.u32 %v879, %v880
        %v883 = vsel %vm677, %v875, %v882
        %v884 = vrot.slane %v879, 4
        %v888 = vld [vmem:[#allocation2] sm:$0xf]
        %v889 = vsel %vm760, %v874, %v888
        %890 = vst [vmem:[#allocation2] sm:$0xf] %v889
        %891 = vst.msk [vmem:[#allocation2 + $0x4] sm:$0xf] %vm764, %v883
        %v892 = vld [vmem:[#allocation2 + $0x8] sm:$0x1]
        %v893 = vsel %vm492, %v884, %v892
        %894 = vst [vmem:[#allocation2 + $0x8] sm:$0x1] %v893
        %v895 = vld [vmem:[%s434] sm:$0xff]
        %v896 = vld [vmem:[%s434 + $0x8] sm:$0xff]
        %v897 = vpack.c.bf16 %v896, %v895
        %v898 = vld [vmem:[%s3] sm:$0xf]
        %v899 = vld [vmem:[%s3 + $0x4] sm:$0xf]
        %v900 = vld [vmem:[%s3 + $0x8] sm:$0xf]
        %v901 = vld [vmem:[%s3 + $0xc] sm:$0xf]
        %v902 = vld [vmem:[%s4] sm:$0x1]
        %v904 = vlaneseq
        %v905 = vshrl.u32 %v904, 7
        %v906 = vsub.s32 0, %v905
        %v907 = vrot.slane %v902, %v906
        %v913 = vunpack.c.l.b16 %v898
        %v914 = vunpack.c.l.b16 %v899
        %v915 = vunpack.c.l.b16 %v900
        %v916 = vunpack.c.l.b16 %v901
        %v917 = vpack.c.b16 %v914, %v913
        %v918 = vpack.c.b16 %v916, %v915
        %v922 = vsel %vm566, %v897, 0
        %924 = vmatprep.subr.bf16.mxu0 0
        %925 = vmatpush1.bf16.msra.mxu0 %v917
        %926 = vmatprep.subr.bf16.mxu0 0
        %927 = vmatpush1.bf16.msra.mxu0 %v918
        %928 = vmatprep.subr.bf16.mxu0 0
        %929 = vmatpush1.bf16.msra.mxu0 0
        %930 = vmatprep.subr.bf16.mxu0 0
        %931 = vmatpush1.bf16.msra.mxu0 0
        %932 = vmatprep.subr.bf16.mxu0 0
        %933 = vmatpush1.bf16.msra.mxu0 0
        %934 = vmatprep.subr.bf16.mxu0 0
        %935 = vmatpush1.bf16.msra.mxu0 0
        %936 = vmatprep.subr.bf16.mxu0 0
        %937 = vmatpush1.bf16.msra.mxu0 0
        %938 = vmatprep.subr.bf16.mxu0 0
        %939 = vmatpush1.bf16.msra.mxu0 0
        %940 = vmatprep.subr.bf16.mxu0 0
        %941 = vmatpush1.bf16.msra.mxu0 0
        %942 = vmatprep.subr.bf16.mxu0 0
        %943 = vmatpush1.bf16.msra.mxu0 0
        %944 = vmatprep.subr.bf16.mxu0 0
        %945 = vmatpush1.bf16.msra.mxu0 0
        %946 = vmatprep.subr.bf16.mxu0 0
        %947 = vmatpush1.bf16.msra.mxu0 0
        %948 = vmatprep.subr.bf16.mxu0 0
        %949 = vmatpush1.bf16.msra.mxu0 0
        %950 = vmatprep.subr.bf16.mxu0 0
        %951 = vmatpush1.bf16.msra.mxu0 0
        %952 = vmatprep.subr.bf16.mxu0 0
        %953 = vmatpush1.bf16.msra.mxu0 0
        %954 = vmatprep.subr.bf16.mxu0 0
        %955 = vmatpush1.bf16.msra.mxu0 0
        %956 = vmatprep.mubr.bf16.mxu0 0
        %957 = vmatmul.mubr.bf16.gmra.mrb[0].mxu0 %v922
        %v958 = vpop.f32.mrb[0].mxu0
        %v959 = vadd.f32 %v907, %v958
        %v960 = vpop.f32.mrb[0].mxu0
        %v961 = vpop.f32.mrb[0].mxu0
        %v962 = vadd.f32 %v907, %v961
        %v963 = vpop.f32.mrb[0].mxu0
        %964 = vdwg.mxu0
        %v965 = vmax.f32 %v959, 0.0
        %v966 = vmax.f32 %v962, 0.0
        %v967 = vpack.c.bf16 %v966, %v965
        %v969 = vunpack.c.l.b16 %v967
        %v970 = vunpack.c.h.b16 %v967
        %v971 = vpack.c.b16 %v969, %v969
        %v972 = vpack.c.b16 %v970, %v970
        %v974 = vshrl.u32 %v971, 16
        %v976 = vrot.slane %v974, 7
        %v977 = vshll.u32 %v971, 16
        %v979 = vor.u32 %v976, %v977
        %v980 = vrot.slane %v976, 4
        %v982 = vshrl.u32 %v972, 16
        %v984 = vrot.slane %v982, 7
        %v985 = vshll.u32 %v972, 16
        %v987 = vor.u32 %v984, %v985
        %v988 = vsel %vm677, %v980, %v987
        %v989 = vrot.slane %v984, 4
        %s993 = scalar_lea.vmem [#allocation2], 60
        %v994 = vld [vmem:[%s993] sm:$0xf]
        %v995 = vsel %vm760, %v979, %v994
        %996 = vst [vmem:[%s993] sm:$0xf] %v995
        %997 = vst.msk [vmem:[%s993 + $0x4] sm:$0xf] %vm764, %v988
        %v998 = vld [vmem:[%s993 + $0x8] sm:$0x1]
        %v999 = vsel %vm492, %v989, %v998
        %1000 = vst [vmem:[%s993 + $0x8] sm:$0x1] %v999
        %p1001 = scmp.eq.s32.totalorder %s34, 0
        // Predicated region
        $region69: #{bottleneck_forward.1} parent=55 // pred_check
          %p1002 = pneg %p1001
        $region70: #{bottleneck_forward.1} parent=55 // pred_check_branch
          %1004 = sbr.rel (%p1002) target = $region72
        $region71: #{bottleneck_forward.1} parent=55 // pred_region
          %v1005 = vld [vmem:[#allocation2] sm:$0xf]
          %v1006 = vsel %vm760, 0, %v1005
          %1007 = vst [vmem:[#allocation2] sm:$0xf] %v1006
          %1008 = vst.msk [vmem:[#allocation2 + $0x4] sm:$0xf] %vm764, 0
          %v1009 = vld [vmem:[#allocation2 + $0x8] sm:$0x1]
          %v1010 = vsel %vm492, 0, %v1009
          %1011 = vst [vmem:[#allocation2 + $0x8] sm:$0x1] %v1010
        $region72: #{bottleneck_forward.1} parent=55 // pred_fallthru
          _
        %p1012 = scmp.eq.s32.totalorder %s34, 3
        // Predicated region
        $region73: #{bottleneck_forward.1} parent=55 // pred_check
          %p1013 = pneg %p1012
        $region74: #{bottleneck_forward.1} parent=55 // pred_check_branch
          %1015 = sbr.rel (%p1013) target = $region76
        $region75: #{bottleneck_forward.1} parent=55 // pred_region
          %v1016 = vld [vmem:[%s993] sm:$0xf]
          %v1017 = vsel %vm760, 0, %v1016
          %1018 = vst [vmem:[%s993] sm:$0xf] %v1017
          %1019 = vst.msk [vmem:[%s993 + $0x4] sm:$0xf] %vm764, 0
          %v1020 = vld [vmem:[%s993 + $0x8] sm:$0x1]
          %v1021 = vsel %vm492, 0, %v1020
          %1022 = vst [vmem:[%s993 + $0x8] sm:$0x1] %v1021
        $region76: #{bottleneck_forward.1} parent=55 // pred_fallthru
          _
        %v1023 = vld [vmem:[#allocation2] sm:$0xf]
        %v1024 = vld [vmem:[#allocation2 + $0x4] sm:$0xf]
        %v1025 = vld [vmem:[#allocation2 + $0xc] sm:$0xf]
        %v1026 = vld [vmem:[#allocation2 + $0x10] sm:$0xf]
        %v1027 = vld [vmem:[#allocation2 + $0x18] sm:$0xf]
        %v1028 = vld [vmem:[#allocation2 + $0x1c] sm:$0xf]
        %v1029 = vld [vmem:[#allocation2 + $0x24] sm:$0xf]
        %v1030 = vld [vmem:[#allocation2 + $0x28] sm:$0xf]
        %v1039 = vunpack.c.l.b16 %v1023
        %v1040 = vunpack.c.l.b16 %v1024
        %v1041 = vunpack.c.l.b16 %v1025
        %v1042 = vunpack.c.l.b16 %v1026
        %v1043 = vunpack.c.l.b16 %v1027
        %v1044 = vunpack.c.l.b16 %v1028
        %v1045 = vunpack.c.l.b16 %v1029
        %v1046 = vunpack.c.l.b16 %v1030
        %v1047 = vpack.c.b16 %v1040, %v1039
        %v1048 = vpack.c.b16 %v1042, %v1041
        %v1049 = vpack.c.b16 %v1044, %v1043
        %v1050 = vpack.c.b16 %v1046, %v1045
        %vm1055 = vcmask 64512
        %1056 = vst.msk [vmem:[#allocation3] sm:$0xff] %vm1055, %v1047
        %1057 = vst.msk [vmem:[#allocation3 + $0x8] sm:$0xff] %vm1055, %v1048
        %1058 = vst.msk [vmem:[#allocation3 + $0x10] sm:$0xff] %vm1055, %v1049
        %1059 = vst.msk [vmem:[#allocation3 + $0x18] sm:$0xff] %vm1055, %v1050
        %v1060 = vld [vmem:[#allocation2] sm:$0xf]
        %v1061 = vld [vmem:[#allocation2 + $0x4] sm:$0xf]
        %v1062 = vld [vmem:[#allocation2 + $0x8] sm:$0x1]
        %v1063 = vld [vmem:[#allocation2 + $0xc] sm:$0xf]
        %v1064 = vld [vmem:[#allocation2 + $0x10] sm:$0xf]
        %v1065 = vld [vmem:[#allocation2 + $0x14] sm:$0x1]
        %v1066 = vld [vmem:[#allocation2 + $0x18] sm:$0xf]
        %v1067 = vld [vmem:[#allocation2 + $0x1c] sm:$0xf]
        %v1068 = vld [vmem:[#allocation2 + $0x20] sm:$0x1]
        %v1069 = vld [vmem:[#allocation2 + $0x24] sm:$0xf]
        %v1070 = vld [vmem:[#allocation2 + $0x28] sm:$0xf]
        %v1071 = vld [vmem:[#allocation2 + $0x2c] sm:$0x1]
        %v1084 = vunpack.c.l.b16 %v1060
        %v1085 = vunpack.c.l.b16 %v1061
        %v1086 = vunpack.c.l.b16 %v1062
        %v1087 = vunpack.c.l.b16 %v1063
        %v1088 = vunpack.c.l.b16 %v1064
        %v1089 = vunpack.c.l.b16 %v1065
        %v1090 = vunpack.c.l.b16 %v1066
        %v1091 = vunpack.c.l.b16 %v1067
        %v1092 = vunpack.c.l.b16 %v1068
        %v1093 = vunpack.c.l.b16 %v1069
        %v1094 = vunpack.c.l.b16 %v1070
        %v1095 = vunpack.c.l.b16 %v1071
        %v1096 = vpack.c.b16 %v1085, %v1084
        %v1097 = vpack.c.b16 %v1086, %v1086
        %v1098 = vpack.c.b16 %v1088, %v1087
        %v1099 = vpack.c.b16 %v1089, %v1089
        %v1100 = vpack.c.b16 %v1091, %v1090
        %v1101 = vpack.c.b16 %v1092, %v1092
        %v1102 = vpack.c.b16 %v1094, %v1093
        %v1103 = vpack.c.b16 %v1095, %v1095
        %vm1104 = vsmask.f32 7424
        %v1106 = vshrl.u32 %v1096, 16
        %v1108 = vshll.u32 %v1096, 16
        %v1110 = vrot.slane %v1108, 1
        %v1111 = vor.u32 %v1106, %v1110
        %v1113 = vshll.u32 %v1097, 16
        %v1115 = vrot.slane %v1113, 1
        %v1116 = vsel %vm1104, %v1111, %v1115
        %v1118 = vshrl.u32 %v1098, 16
        %v1120 = vshll.u32 %v1098, 16
        %v1122 = vrot.slane %v1120, 1
        %v1123 = vor.u32 %v1118, %v1122
        %v1125 = vshll.u32 %v1099, 16
        %v1127 = vrot.slane %v1125, 1
        %v1128 = vsel %vm1104, %v1123, %v1127
        %v1130 = vshrl.u32 %v1100, 16
        %v1132 = vshll.u32 %v1100, 16
        %v1134 = vrot.slane %v1132, 1
        %v1135 = vor.u32 %v1130, %v1134
        %v1137 = vshll.u32 %v1101, 16
        %v1139 = vrot.slane %v1137, 1
        %v1140 = vsel %vm1104, %v1135, %v1139
        %v1142 = vshrl.u32 %v1102, 16
        %v1144 = vshll.u32 %v1102, 16
        %v1146 = vrot.slane %v1144, 1
        %v1147 = vor.u32 %v1142, %v1146
        %v1149 = vshll.u32 %v1103, 16
        %v1151 = vrot.slane %v1149, 1
        %v1152 = vsel %vm1104, %v1147, %v1151
        %1153 = vrot.lane.b32.xlu0 %v1116, 8
        %v1154 = vpop.permute.xlu0 %1153
        %1155 = vrot.lane.b32.xlu0 %v1128, 8
        %v1156 = vpop.permute.xlu0 %1155
        %1157 = vrot.lane.b32.xlu0 %v1140, 8
        %v1158 = vpop.permute.xlu0 %1157
        %1159 = vrot.lane.b32.xlu0 %v1152, 8
        %v1160 = vpop.permute.xlu0 %1159
        %vm1165 = vcmask 130112
        %1166 = vst.msk [vmem:[#allocation3] sm:$0xff] %vm1165, %v1154
        %1167 = vst.msk [vmem:[#allocation3 + $0x8] sm:$0xff] %vm1165, %v1156
        %1168 = vst.msk [vmem:[#allocation3 + $0x10] sm:$0xff] %vm1165, %v1158
        %1169 = vst.msk [vmem:[#allocation3 + $0x18] sm:$0xff] %vm1165, %v1160
        %v1170 = vld [vmem:[#allocation2] sm:$0xe]
        %v1171 = vld [vmem:[#allocation2 + $0x4] sm:$0xf]
        %v1172 = vld [vmem:[#allocation2 + $0x8] sm:$0x1]
        %v1173 = vld [vmem:[#allocation2 + $0xc] sm:$0xe]
        %v1174 = vld [vmem:[#allocation2 + $0x10] sm:$0xf]
        %v1175 = vld [vmem:[#allocation2 + $0x14] sm:$0x1]
        %v1176 = vld [vmem:[#allocation2 + $0x18] sm:$0xe]
        %v1177 = vld [vmem:[#allocation2 + $0x1c] sm:$0xf]
        %v1178 = vld [vmem:[#allocation2 + $0x20] sm:$0x1]
        %v1179 = vld [vmem:[#allocation2 + $0x24] sm:$0xe]
        %v1180 = vld [vmem:[#allocation2 + $0x28] sm:$0xf]
        %v1181 = vld [vmem:[#allocation2 + $0x2c] sm:$0x1]
        %v1194 = vunpack.c.l.b16 %v1170
        %v1195 = vunpack.c.l.b16 %v1171
        %v1196 = vunpack.c.l.b16 %v1172
        %v1197 = vunpack.c.l.b16 %v1173
        %v1198 = vunpack.c.l.b16 %v1174
        %v1199 = vunpack.c.l.b16 %v1175
        %v1200 = vunpack.c.l.b16 %v1176
        %v1201 = vunpack.c.l.b16 %v1177
        %v1202 = vunpack.c.l.b16 %v1178
        %v1203 = vunpack.c.l.b16 %v1179
        %v1204 = vunpack.c.l.b16 %v1180
        %v1205 = vunpack.c.l.b16 %v1181
        %v1206 = vpack.c.b16 %v1195, %v1194
        %v1207 = vpack.c.b16 %v1196, %v1196
        %v1208 = vpack.c.b16 %v1198, %v1197
        %v1209 = vpack.c.b16 %v1199, %v1199
        %v1210 = vpack.c.b16 %v1201, %v1200
        %v1211 = vpack.c.b16 %v1202, %v1202
        %v1212 = vpack.c.b16 %v1204, %v1203
        %v1213 = vpack.c.b16 %v1205, %v1205
        %vm1214 = vcmask 1046528
        %v1215 = vrot.slane %v1206, 1
        %v1216 = vrot.slane %v1207, 1
        %v1217 = vsel %vm1214, %v1215, %v1216
        %v1218 = vrot.slane %v1208, 1
        %v1219 = vrot.slane %v1209, 1
        %v1220 = vsel %vm1214, %v1218, %v1219
        %v1221 = vrot.slane %v1210, 1
        %v1222 = vrot.slane %v1211, 1
        %v1223 = vsel %vm1214, %v1221, %v1222
        %v1224 = vrot.slane %v1212, 1
        %v1225 = vrot.slane %v1213, 1
        %v1226 = vsel %vm1214, %v1224, %v1225
        %1227 = vrot.lane.b32.xlu0 %v1217, 16
        %v1228 = vpop.permute.xlu0 %1227
        %1229 = vrot.lane.b32.xlu0 %v1220, 16
        %v1230 = vpop.permute.xlu0 %1229
        %1231 = vrot.lane.b32.xlu0 %v1223, 16
        %v1232 = vpop.permute.xlu0 %1231
        %1233 = vrot.lane.b32.xlu0 %v1226, 16
        %v1234 = vpop.permute.xlu0 %1233
        %vm1239 = vcmask 195712
        %1240 = vst.msk [vmem:[#allocation3] sm:$0xff] %vm1239, %v1228
        %1241 = vst.msk [vmem:[#allocation3 + $0x8] sm:$0xff] %vm1239, %v1230
        %1242 = vst.msk [vmem:[#allocation3 + $0x10] sm:$0xff] %vm1239, %v1232
        %1243 = vst.msk [vmem:[#allocation3 + $0x18] sm:$0xff] %vm1239, %v1234
        %v1244 = vld [vmem:[%s758] sm:$0xf]
        %v1245 = vld [vmem:[%s758 + $0x4] sm:$0xf]
        %v1246 = vld [vmem:[%s758 + $0xc] sm:$0xf]
        %v1247 = vld [vmem:[%s758 + $0x10] sm:$0xf]
        %v1248 = vld [vmem:[%s758 + $0x18] sm:$0xf]
        %v1249 = vld [vmem:[%s758 + $0x1c] sm:$0xf]
        %v1250 = vld [vmem:[%s758 + $0x24] sm:$0xf]
        %v1251 = vld [vmem:[%s758 + $0x28] sm:$0xf]
        %v1260 = vunpack.c.l.b16 %v1244
        %v1261 = vunpack.c.l.b16 %v1245
        %v1262 = vunpack.c.l.b16 %v1246
        %v1263 = vunpack.c.l.b16 %v1247
        %v1264 = vunpack.c.l.b16 %v1248
        %v1265 = vunpack.c.l.b16 %v1249
        %v1266 = vunpack.c.l.b16 %v1250
        %v1267 = vunpack.c.l.b16 %v1251
        %v1268 = vpack.c.b16 %v1261, %v1260
        %v1269 = vpack.c.b16 %v1263, %v1262
        %v1270 = vpack.c.b16 %v1265, %v1264
        %v1271 = vpack.c.b16 %v1267, %v1266
        %1272 = vrot.lane.b32.xlu0 %v1268, 24
        %v1273 = vpop.permute.xlu0 %1272
        %1274 = vrot.lane.b32.xlu0 %v1269, 24
        %v1275 = vpop.permute.xlu0 %1274
        %1276 = vrot.lane.b32.xlu0 %v1270, 24
        %v1277 = vpop.permute.xlu0 %1276
        %1278 = vrot.lane.b32.xlu0 %v1271, 24
        %v1279 = vpop.permute.xlu0 %1278
        %vm1284 = vcmask 261312
        %1285 = vst.msk [vmem:[#allocation3] sm:$0xff] %vm1284, %v1273
        %1286 = vst.msk [vmem:[#allocation3 + $0x8] sm:$0xff] %vm1284, %v1275
        %1287 = vst.msk [vmem:[#allocation3 + $0x10] sm:$0xff] %vm1284, %v1277
        %1288 = vst.msk [vmem:[#allocation3 + $0x18] sm:$0xff] %vm1284, %v1279
        %v1289 = vld [vmem:[%s758] sm:$0xf]
        %v1290 = vld [vmem:[%s758 + $0x4] sm:$0xf]
        %v1291 = vld [vmem:[%s758 + $0x8] sm:$0x1]
        %v1292 = vld [vmem:[%s758 + $0xc] sm:$0xf]
        %v1293 = vld [vmem:[%s758 + $0x10] sm:$0xf]
        %v1294 = vld [vmem:[%s758 + $0x14] sm:$0x1]
        %v1295 = vld [vmem:[%s758 + $0x18] sm:$0xf]
        %v1296 = vld [vmem:[%s758 + $0x1c] sm:$0xf]
        %v1297 = vld [vmem:[%s758 + $0x20] sm:$0x1]
        %v1298 = vld [vmem:[%s758 + $0x24] sm:$0xf]
        %v1299 = vld [vmem:[%s758 + $0x28] sm:$0xf]
        %v1300 = vld [vmem:[%s758 + $0x2c] sm:$0x1]
        %v1313 = vunpack.c.l.b16 %v1289
        %v1314 = vunpack.c.l.b16 %v1290
        %v1315 = vunpack.c.l.b16 %v1291
        %v1316 = vunpack.c.l.b16 %v1292
        %v1317 = vunpack.c.l.b16 %v1293
        %v1318 = vunpack.c.l.b16 %v1294
        %v1319 = vunpack.c.l.b16 %v1295
        %v1320 = vunpack.c.l.b16 %v1296
        %v1321 = vunpack.c.l.b16 %v1297
        %v1322 = vunpack.c.l.b16 %v1298
        %v1323 = vunpack.c.l.b16 %v1299
        %v1324 = vunpack.c.l.b16 %v1300
        %v1325 = vpack.c.b16 %v1314, %v1313
        %v1326 = vpack.c.b16 %v1315, %v1315
        %v1327 = vpack.c.b16 %v1317, %v1316
        %v1328 = vpack.c.b16 %v1318, %v1318
        %v1329 = vpack.c.b16 %v1320, %v1319
        %v1330 = vpack.c.b16 %v1321, %v1321
        %v1331 = vpack.c.b16 %v1323, %v1322
        %v1332 = vpack.c.b16 %v1324, %v1324
        %v1334 = vshrl.u32 %v1325, 16
        %v1336 = vshll.u32 %v1325, 16
        %v1338 = vrot.slane %v1336, 1
        %v1339 = vor.u32 %v1334, %v1338
        %v1341 = vshll.u32 %v1326, 16
        %v1343 = vrot.slane %v1341, 1
        %v1344 = vsel %vm1104, %v1339, %v1343
        %v1346 = vshrl.u32 %v1327, 16
        %v1348 = vshll.u32 %v1327, 16
        %v1350 = vrot.slane %v1348, 1
        %v1351 = vor.u32 %v1346, %v1350
        %v1353 = vshll.u32 %v1328, 16
        %v1355 = vrot.slane %v1353, 1
        %v1356 = vsel %vm1104, %v1351, %v1355
        %v1358 = vshrl.u32 %v1329, 16
        %v1360 = vshll.u32 %v1329, 16
        %v1362 = vrot.slane %v1360, 1
        %v1363 = vor.u32 %v1358, %v1362
        %v1365 = vshll.u32 %v1330, 16
        %v1367 = vrot.slane %v1365, 1
        %v1368 = vsel %vm1104, %v1363, %v1367
        %v1370 = vshrl.u32 %v1331, 16
        %v1372 = vshll.u32 %v1331, 16
        %v1374 = vrot.slane %v1372, 1
        %v1375 = vor.u32 %v1370, %v1374
        %v1377 = vshll.u32 %v1332, 16
        %v1379 = vrot.slane %v1377, 1
        %v1380 = vsel %vm1104, %v1375, %v1379
        %1381 = vrot.lane.b32.xlu0 %v1344, 32
        %v1382 = vpop.permute.xlu0 %1381
        %1383 = vrot.lane.b32.xlu0 %v1356, 32
        %v1384 = vpop.permute.xlu0 %1383
        %1385 = vrot.lane.b32.xlu0 %v1368, 32
        %v1386 = vpop.permute.xlu0 %1385
        %1387 = vrot.lane.b32.xlu0 %v1380, 32
        %v1388 = vpop.permute.xlu0 %1387
        %vm1393 = vcmask 326912
        %1394 = vst.msk [vmem:[#allocation3] sm:$0xff] %vm1393, %v1382
        %1395 = vst.msk [vmem:[#allocation3 + $0x8] sm:$0xff] %vm1393, %v1384
        %1396 = vst.msk [vmem:[#allocation3 + $0x10] sm:$0xff] %vm1393, %v1386
        %1397 = vst.msk [vmem:[#allocation3 + $0x18] sm:$0xff] %vm1393, %v1388
        %v1398 = vld [vmem:[%s758] sm:$0xe]
        %v1399 = vld [vmem:[%s758 + $0x4] sm:$0xf]
        %v1400 = vld [vmem:[%s758 + $0x8] sm:$0x1]
        %v1401 = vld [vmem:[%s758 + $0xc] sm:$0xe]
        %v1402 = vld [vmem:[%s758 + $0x10] sm:$0xf]
        %v1403 = vld [vmem:[%s758 + $0x14] sm:$0x1]
        %v1404 = vld [vmem:[%s758 + $0x18] sm:$0xe]
        %v1405 = vld [vmem:[%s758 + $0x1c] sm:$0xf]
        %v1406 = vld [vmem:[%s758 + $0x20] sm:$0x1]
        %v1407 = vld [vmem:[%s758 + $0x24] sm:$0xe]
        %v1408 = vld [vmem:[%s758 + $0x28] sm:$0xf]
        %v1409 = vld [vmem:[%s758 + $0x2c] sm:$0x1]
        %v1422 = vunpack.c.l.b16 %v1398
        %v1423 = vunpack.c.l.b16 %v1399
        %v1424 = vunpack.c.l.b16 %v1400
        %v1425 = vunpack.c.l.b16 %v1401
        %v1426 = vunpack.c.l.b16 %v1402
        %v1427 = vunpack.c.l.b16 %v1403
        %v1428 = vunpack.c.l.b16 %v1404
        %v1429 = vunpack.c.l.b16 %v1405
        %v1430 = vunpack.c.l.b16 %v1406
        %v1431 = vunpack.c.l.b16 %v1407
        %v1432 = vunpack.c.l.b16 %v1408
        %v1433 = vunpack.c.l.b16 %v1409
        %v1434 = vpack.c.b16 %v1423, %v1422
        %v1435 = vpack.c.b16 %v1424, %v1424
        %v1436 = vpack.c.b16 %v1426, %v1425
        %v1437 = vpack.c.b16 %v1427, %v1427
        %v1438 = vpack.c.b16 %v1429, %v1428
        %v1439 = vpack.c.b16 %v1430, %v1430
        %v1440 = vpack.c.b16 %v1432, %v1431
        %v1441 = vpack.c.b16 %v1433, %v1433
        %v1442 = vrot.slane %v1434, 1
        %v1443 = vrot.slane %v1435, 1
        %v1444 = vsel %vm1214, %v1442, %v1443
        %v1445 = vrot.slane %v1436, 1
        %v1446 = vrot.slane %v1437, 1
        %v1447 = vsel %vm1214, %v1445, %v1446
        %v1448 = vrot.slane %v1438, 1
        %v1449 = vrot.slane %v1439, 1
        %v1450 = vsel %vm1214, %v1448, %v1449
        %v1451 = vrot.slane %v1440, 1
        %v1452 = vrot.slane %v1441, 1
        %v1453 = vsel %vm1214, %v1451, %v1452
        %1454 = vrot.lane.b32.xlu0 %v1444, 40
        %v1455 = vpop.permute.xlu0 %1454
        %1456 = vrot.lane.b32.xlu0 %v1447, 40
        %v1457 = vpop.permute.xlu0 %1456
        %1458 = vrot.lane.b32.xlu0 %v1450, 40
        %v1459 = vpop.permute.xlu0 %1458
        %1460 = vrot.lane.b32.xlu0 %v1453, 40
        %v1461 = vpop.permute.xlu0 %1460
        %vm1466 = vcmask 392512
        %1467 = vst.msk [vmem:[#allocation3] sm:$0xff] %vm1466, %v1455
        %1468 = vst.msk [vmem:[#allocation3 + $0x8] sm:$0xff] %vm1466, %v1457
        %1469 = vst.msk [vmem:[#allocation3 + $0x10] sm:$0xff] %vm1466, %v1459
        %1470 = vst.msk [vmem:[#allocation3 + $0x18] sm:$0xff] %vm1466, %v1461
        %s1471 = scalar_lea.vmem [#allocation2], 24
        %v1472 = vld [vmem:[%s1471] sm:$0xf]
        %v1473 = vld [vmem:[%s1471 + $0x4] sm:$0xf]
        %v1474 = vld [vmem:[%s1471 + $0xc] sm:$0xf]
        %v1475 = vld [vmem:[%s1471 + $0x10] sm:$0xf]
        %v1476 = vld [vmem:[%s1471 + $0x18] sm:$0xf]
        %v1477 = vld [vmem:[%s1471 + $0x1c] sm:$0xf]
        %v1478 = vld [vmem:[%s1471 + $0x24] sm:$0xf]
        %v1479 = vld [vmem:[%s1471 + $0x28] sm:$0xf]
        %v1488 = vunpack.c.l.b16 %v1472
        %v1489 = vunpack.c.l.b16 %v1473
        %v1490 = vunpack.c.l.b16 %v1474
        %v1491 = vunpack.c.l.b16 %v1475
        %v1492 = vunpack.c.l.b16 %v1476
        %v1493 = vunpack.c.l.b16 %v1477
        %v1494 = vunpack.c.l.b16 %v1478
        %v1495 = vunpack.c.l.b16 %v1479
        %v1496 = vpack.c.b16 %v1489, %v1488
        %v1497 = vpack.c.b16 %v1491, %v1490
        %v1498 = vpack.c.b16 %v1493, %v1492
        %v1499 = vpack.c.b16 %v1495, %v1494
        %1500 = vrot.lane.b32.xlu0 %v1496, 48
        %v1501 = vpop.permute.xlu0 %1500
        %1502 = vrot.lane.b32.xlu0 %v1497, 48
        %v1503 = vpop.permute.xlu0 %1502
        %1504 = vrot.lane.b32.xlu0 %v1498, 48
        %v1505 = vpop.permute.xlu0 %1504
        %1506 = vrot.lane.b32.xlu0 %v1499, 48
        %v1507 = vpop.permute.xlu0 %1506
        %vm1512 = vcmask 458112
        %1513 = vst.msk [vmem:[#allocation3] sm:$0xff] %vm1512, %v1501
        %1514 = vst.msk [vmem:[#allocation3 + $0x8] sm:$0xff] %vm1512, %v1503
        %1515 = vst.msk [vmem:[#allocation3 + $0x10] sm:$0xff] %vm1512, %v1505
        %1516 = vst.msk [vmem:[#allocation3 + $0x18] sm:$0xff] %vm1512, %v1507
        %v1517 = vld [vmem:[%s1471] sm:$0xf]
        %v1518 = vld [vmem:[%s1471 + $0x4] sm:$0xf]
        %v1519 = vld [vmem:[%s1471 + $0x8] sm:$0x1]
        %v1520 = vld [vmem:[%s1471 + $0xc] sm:$0xf]
        %v1521 = vld [vmem:[%s1471 + $0x10] sm:$0xf]
        %v1522 = vld [vmem:[%s1471 + $0x14] sm:$0x1]
        %v1523 = vld [vmem:[%s1471 + $0x18] sm:$0xf]
        %v1524 = vld [vmem:[%s1471 + $0x1c] sm:$0xf]
        %v1525 = vld [vmem:[%s1471 + $0x20] sm:$0x1]
        %v1526 = vld [vmem:[%s1471 + $0x24] sm:$0xf]
        %v1527 = vld [vmem:[%s1471 + $0x28] sm:$0xf]
        %v1528 = vld [vmem:[%s1471 + $0x2c] sm:$0x1]
        %v1541 = vunpack.c.l.b16 %v1517
        %v1542 = vunpack.c.l.b16 %v1518
        %v1543 = vunpack.c.l.b16 %v1519
        %v1544 = vunpack.c.l.b16 %v1520
        %v1545 = vunpack.c.l.b16 %v1521
        %v1546 = vunpack.c.l.b16 %v1522
        %v1547 = vunpack.c.l.b16 %v1523
        %v1548 = vunpack.c.l.b16 %v1524
        %v1549 = vunpack.c.l.b16 %v1525
        %v1550 = vunpack.c.l.b16 %v1526
        %v1551 = vunpack.c.l.b16 %v1527
        %v1552 = vunpack.c.l.b16 %v1528
        %v1553 = vpack.c.b16 %v1542, %v1541
        %v1554 = vpack.c.b16 %v1543, %v1543
        %v1555 = vpack.c.b16 %v1545, %v1544
        %v1556 = vpack.c.b16 %v1546, %v1546
        %v1557 = vpack.c.b16 %v1548, %v1547
        %v1558 = vpack.c.b16 %v1549, %v1549
        %v1559 = vpack.c.b16 %v1551, %v1550
        %v1560 = vpack.c.b16 %v1552, %v1552
        %v1562 = vshrl.u32 %v1553, 16
        %v1564 = vshll.u32 %v1553, 16
        %v1566 = vrot.slane %v1564, 1
        %v1567 = vor.u32 %v1562, %v1566
        %v1569 = vshll.u32 %v1554, 16
        %v1571 = vrot.slane %v1569, 1
        %v1572 = vsel %vm1104, %v1567, %v1571
        %v1574 = vshrl.u32 %v1555, 16
        %v1576 = vshll.u32 %v1555, 16
        %v1578 = vrot.slane %v1576, 1
        %v1579 = vor.u32 %v1574, %v1578
        %v1581 = vshll.u32 %v1556, 16
        %v1583 = vrot.slane %v1581, 1
        %v1584 = vsel %vm1104, %v1579, %v1583
        %v1586 = vshrl.u32 %v1557, 16
        %v1588 = vshll.u32 %v1557, 16
        %v1590 = vrot.slane %v1588, 1
        %v1591 = vor.u32 %v1586, %v1590
        %v1593 = vshll.u32 %v1558, 16
        %v1595 = vrot.slane %v1593, 1
        %v1596 = vsel %vm1104, %v1591, %v1595
        %v1598 = vshrl.u32 %v1559, 16
        %v1600 = vshll.u32 %v1559, 16
        %v1602 = vrot.slane %v1600, 1
        %v1603 = vor.u32 %v1598, %v1602
        %v1605 = vshll.u32 %v1560, 16
        %v1607 = vrot.slane %v1605, 1
        %v1608 = vsel %vm1104, %v1603, %v1607
        %1609 = vrot.lane.b32.xlu0 %v1572, 56
        %v1610 = vpop.permute.xlu0 %1609
        %1611 = vrot.lane.b32.xlu0 %v1584, 56
        %v1612 = vpop.permute.xlu0 %1611
        %1613 = vrot.lane.b32.xlu0 %v1596, 56
        %v1614 = vpop.permute.xlu0 %1613
        %1615 = vrot.lane.b32.xlu0 %v1608, 56
        %v1616 = vpop.permute.xlu0 %1615
        %vm1621 = vcmask 523712
        %1622 = vst.msk [vmem:[#allocation3] sm:$0xff] %vm1621, %v1610
        %1623 = vst.msk [vmem:[#allocation3 + $0x8] sm:$0xff] %vm1621, %v1612
        %1624 = vst.msk [vmem:[#allocation3 + $0x10] sm:$0xff] %vm1621, %v1614
        %1625 = vst.msk [vmem:[#allocation3 + $0x18] sm:$0xff] %vm1621, %v1616
        %v1626 = vld [vmem:[%s1471] sm:$0xe]
        %v1627 = vld [vmem:[%s1471 + $0x4] sm:$0xf]
        %v1628 = vld [vmem:[%s1471 + $0x8] sm:$0x1]
        %v1629 = vld [vmem:[%s1471 + $0xc] sm:$0xe]
        %v1630 = vld [vmem:[%s1471 + $0x10] sm:$0xf]
        %v1631 = vld [vmem:[%s1471 + $0x14] sm:$0x1]
        %v1632 = vld [vmem:[%s1471 + $0x18] sm:$0xe]
        %v1633 = vld [vmem:[%s1471 + $0x1c] sm:$0xf]
        %v1634 = vld [vmem:[%s1471 + $0x20] sm:$0x1]
        %v1635 = vld [vmem:[%s1471 + $0x24] sm:$0xe]
        %v1636 = vld [vmem:[%s1471 + $0x28] sm:$0xf]
        %v1637 = vld [vmem:[%s1471 + $0x2c] sm:$0x1]
        %v1650 = vunpack.c.l.b16 %v1626
        %v1651 = vunpack.c.l.b16 %v1627
        %v1652 = vunpack.c.l.b16 %v1628
        %v1653 = vunpack.c.l.b16 %v1629
        %v1654 = vunpack.c.l.b16 %v1630
        %v1655 = vunpack.c.l.b16 %v1631
        %v1656 = vunpack.c.l.b16 %v1632
        %v1657 = vunpack.c.l.b16 %v1633
        %v1658 = vunpack.c.l.b16 %v1634
        %v1659 = vunpack.c.l.b16 %v1635
        %v1660 = vunpack.c.l.b16 %v1636
        %v1661 = vunpack.c.l.b16 %v1637
        %v1662 = vpack.c.b16 %v1651, %v1650
        %v1663 = vpack.c.b16 %v1652, %v1652
        %v1664 = vpack.c.b16 %v1654, %v1653
        %v1665 = vpack.c.b16 %v1655, %v1655
        %v1666 = vpack.c.b16 %v1657, %v1656
        %v1667 = vpack.c.b16 %v1658, %v1658
        %v1668 = vpack.c.b16 %v1660, %v1659
        %v1669 = vpack.c.b16 %v1661, %v1661
        %v1670 = vrot.slane %v1662, 1
        %v1671 = vrot.slane %v1663, 1
        %v1672 = vsel %vm1214, %v1670, %v1671
        %v1673 = vrot.slane %v1664, 1
        %v1674 = vrot.slane %v1665, 1
        %v1675 = vsel %vm1214, %v1673, %v1674
        %v1676 = vrot.slane %v1666, 1
        %v1677 = vrot.slane %v1667, 1
        %v1678 = vsel %vm1214, %v1676, %v1677
        %v1679 = vrot.slane %v1668, 1
        %v1680 = vrot.slane %v1669, 1
        %v1681 = vsel %vm1214, %v1679, %v1680
        %1682 = vrot.lane.b32.xlu0 %v1672, 64
        %v1683 = vpop.permute.xlu0 %1682
        %1684 = vrot.lane.b32.xlu0 %v1675, 64
        %v1685 = vpop.permute.xlu0 %1684
        %1686 = vrot.lane.b32.xlu0 %v1678, 64
        %v1687 = vpop.permute.xlu0 %1686
        %1688 = vrot.lane.b32.xlu0 %v1681, 64
        %v1689 = vpop.permute.xlu0 %1688
        %vm1694 = vcmask 589312
        %1695 = vst.msk [vmem:[#allocation3] sm:$0xff] %vm1694, %v1683
        %1696 = vst.msk [vmem:[#allocation3 + $0x8] sm:$0xff] %vm1694, %v1685
        %1697 = vst.msk [vmem:[#allocation3 + $0x10] sm:$0xff] %vm1694, %v1687
        %1698 = vst.msk [vmem:[#allocation3 + $0x18] sm:$0xff] %vm1694, %v1689
        %v1699 = vld [vmem:[#allocation3] sm:$0xff]
        %v1700 = vld [vmem:[#allocation3 + $0x8] sm:$0xff]
        %v1701 = vld [vmem:[#allocation3 + $0x10] sm:$0xff]
        %v1702 = vld [vmem:[#allocation3 + $0x18] sm:$0xff]
        %v1703 = vld [vmem:[%s5] sm:$0xf]
        %v1704 = vld [vmem:[%s5 + $0x4] sm:$0xf]
        %v1705 = vld [vmem:[%s5 + $0x8] sm:$0xf]
        %v1706 = vld [vmem:[%s5 + $0xc] sm:$0xf]
        %v1707 = vld [vmem:[%s5 + $0x10] sm:$0xf]
        %v1708 = vld [vmem:[%s5 + $0x14] sm:$0xf]
        %v1709 = vld [vmem:[%s5 + $0x18] sm:$0xf]
        %v1710 = vld [vmem:[%s5 + $0x1c] sm:$0xf]
        %v1711 = vld [vmem:[%s5 + $0x20] sm:$0xf]
        %v1712 = vld [vmem:[%s6] sm:$0x1]
        %v1714 = vlaneseq
        %v1715 = vshrl.u32 %v1714, 7
        %v1716 = vsub.s32 0, %v1715
        %v1717 = vrot.slane %v1712, %v1716
        %v1728 = vunpack.c.l.b16 %v1703
        %v1729 = vunpack.c.l.b16 %v1704
        %v1730 = vunpack.c.l.b16 %v1705
        %v1731 = vunpack.c.l.b16 %v1706
        %v1732 = vunpack.c.l.b16 %v1707
        %v1733 = vunpack.c.l.b16 %v1708
        %v1734 = vunpack.c.l.b16 %v1709
        %v1735 = vunpack.c.l.b16 %v1710
        %v1736 = vunpack.c.l.b16 %v1711
        %v1737 = vpack.c.b16 %v1729, %v1728
        %v1738 = vpack.c.b16 %v1731, %v1730
        %v1739 = vpack.c.b16 %v1733, %v1732
        %v1740 = vpack.c.b16 %v1735, %v1734
        %v1741 = vpack.c.b16 %v1736, %v1736
        %vm1746 = vcmask 588800
        %v1748 = vsel %vm1746, %v1699, 0
        %v1751 = vsel %vm1746, %v1700, 0
        %v1754 = vsel %vm1746, %v1701, 0
        %v1757 = vsel %vm1746, %v1702, 0
        %vm1759 = vcmask 1043456
        %v1761 = vsel %vm1759, %v1741, 0
        %1763 = vmatprep.subr.bf16.mxu0 0
        %1764 = vmatpush1.bf16.msra.mxu0 %v1737
        %1765 = vmatprep.subr.bf16.mxu0 0
        %1766 = vmatpush1.bf16.msra.mxu0 %v1738
        %1767 = vmatprep.subr.bf16.mxu0 0
        %1768 = vmatpush1.bf16.msra.mxu0 %v1739
        %1769 = vmatprep.subr.bf16.mxu0 0
        %1770 = vmatpush1.bf16.msra.mxu0 %v1740
        %1771 = vmatprep.subr.bf16.mxu0 0
        %1772 = vmatpush1.bf16.msra.mxu0 %v1761
        %1773 = vmatprep.subr.bf16.mxu0 0
        %1774 = vmatpush1.bf16.msra.mxu0 0
        %1775 = vmatprep.subr.bf16.mxu0 0
        %1776 = vmatpush1.bf16.msra.mxu0 0
        %1777 = vmatprep.subr.bf16.mxu0 0
        %1778 = vmatpush1.bf16.msra.mxu0 0
        %1779 = vmatprep.subr.bf16.mxu0 0
        %1780 = vmatpush1.bf16.msra.mxu0 0
        %1781 = vmatprep.subr.bf16.mxu0 0
        %1782 = vmatpush1.bf16.msra.mxu0 0
        %1783 = vmatprep.subr.bf16.mxu0 0
        %1784 = vmatpush1.bf16.msra.mxu0 0
        %1785 = vmatprep.subr.bf16.mxu0 0
        %1786 = vmatpush1.bf16.msra.mxu0 0
        %1787 = vmatprep.subr.bf16.mxu0 0
        %1788 = vmatpush1.bf16.msra.mxu0 0
        %1789 = vmatprep.subr.bf16.mxu0 0
        %1790 = vmatpush1.bf16.msra.mxu0 0
        %1791 = vmatprep.subr.bf16.mxu0 0
        %1792 = vmatpush1.bf16.msra.mxu0 0
        %1793 = vmatprep.subr.bf16.mxu0 0
        %1794 = vmatpush1.bf16.msra.mxu0 0
        %1795 = vmatprep.mubr.bf16.mxu0 0
        %1796 = vmatmul.mubr.bf16.gmra.mrb[0].mxu0 %v1748
        %v1797 = vpop.f32.mrb[0].mxu0
        %v1798 = vadd.f32 %v1717, %v1797
        %v1799 = vpop.f32.mrb[0].mxu0
        %v1800 = vpop.f32.mrb[0].mxu0
        %v1801 = vadd.f32 %v1717, %v1800
        %v1802 = vpop.f32.mrb[0].mxu0
        %1803 = vmatprep.mubr.bf16.mxu0 0
        %1804 = vmatmul.mubr.bf16.gmra.mrb[0].mxu0 %v1751
        %v1805 = vpop.f32.mrb[0].mxu0
        %v1806 = vadd.f32 %v1717, %v1805
        %v1807 = vpop.f32.mrb[0].mxu0
        %v1808 = vpop.f32.mrb[0].mxu0
        %v1809 = vadd.f32 %v1717, %v1808
        %v1810 = vpop.f32.mrb[0].mxu0
        %1811 = vmatprep.mubr.bf16.mxu0 0
        %1812 = vmatmul.mubr.bf16.gmra.mrb[0].mxu0 %v1754
        %v1813 = vpop.f32.mrb[0].mxu0
        %v1814 = vadd.f32 %v1717, %v1813
        %v1815 = vpop.f32.mrb[0].mxu0
        %v1816 = vpop.f32.mrb[0].mxu0
        %v1817 = vadd.f32 %v1717, %v1816
        %v1818 = vpop.f32.mrb[0].mxu0
        %1819 = vmatprep.mubr.bf16.mxu0 0
        %1820 = vmatmul.mubr.bf16.gmra.mrb[0].mxu0 %v1757
        %v1821 = vpop.f32.mrb[0].mxu0
        %v1822 = vadd.f32 %v1717, %v1821
        %v1823 = vpop.f32.mrb[0].mxu0
        %v1824 = vpop.f32.mrb[0].mxu0
        %v1825 = vadd.f32 %v1717, %v1824
        %v1826 = vpop.f32.mrb[0].mxu0
        %1827 = vdwg.mxu0
        %v1828 = vmax.f32 %v1798, 0.0
        %v1829 = vmax.f32 %v1801, 0.0
        %v1830 = vmax.f32 %v1806, 0.0
        %v1831 = vmax.f32 %v1809, 0.0
        %v1832 = vmax.f32 %v1814, 0.0
        %v1833 = vmax.f32 %v1817, 0.0
        %v1834 = vmax.f32 %v1822, 0.0
        %v1835 = vmax.f32 %v1825, 0.0
        %v1836 = vpack.c.bf16 %v1829, %v1828
        %v1837 = vpack.c.bf16 %v1831, %v1830
        %v1838 = vpack.c.bf16 %v1833, %v1832
        %v1839 = vpack.c.bf16 %v1835, %v1834
        %v1840 = vld [vmem:[%s7] sm:$0xf]
        %v1841 = vld [vmem:[%s8] sm:$0x1]
        %v1843 = vlaneseq
        %v1844 = vshrl.u32 %v1843, 7
        %v1845 = vsub.s32 0, %v1844
        %v1846 = vrot.slane %v1841, %v1845
        %v1849 = vsel %vm1055, %v1836, 0
        %v1852 = vsel %vm1055, %v1837, 0
        %v1855 = vsel %vm1055, %v1838, 0
        %v1858 = vsel %vm1055, %v1839, 0
        %v1861 = vsel %vm1759, %v1840, 0
        %1863 = vmatprep.subr.bf16.mxu0 0
        %1864 = vmatpush1.bf16.msra.mxu0 %v1861
        %1865 = vmatprep.subr.bf16.mxu0 0
        %1866 = vmatpush1.bf16.msra.mxu0 0
        %1867 = vmatprep.subr.bf16.mxu0 0
        %1868 = vmatpush1.bf16.msra.mxu0 0
        %1869 = vmatprep.subr.bf16.mxu0 0
        %1870 = vmatpush1.bf16.msra.mxu0 0
        %1871 = vmatprep.subr.bf16.mxu0 0
        %1872 = vmatpush1.bf16.msra.mxu0 0
        %1873 = vmatprep.subr.bf16.mxu0 0
        %1874 = vmatpush1.bf16.msra.mxu0 0
        %1875 = vmatprep.subr.bf16.mxu0 0
        %1876 = vmatpush1.bf16.msra.mxu0 0
        %1877 = vmatprep.subr.bf16.mxu0 0
        %1878 = vmatpush1.bf16.msra.mxu0 0
        %1879 = vmatprep.subr.bf16.mxu0 0
        %1880 = vmatpush1.bf16.msra.mxu0 0
        %1881 = vmatprep.subr.bf16.mxu0 0
        %1882 = vmatpush1.bf16.msra.mxu0 0
        %1883 = vmatprep.subr.bf16.mxu0 0
        %1884 = vmatpush1.bf16.msra.mxu0 0
        %1885 = vmatprep.subr.bf16.mxu0 0
        %1886 = vmatpush1.bf16.msra.mxu0 0
        %1887 = vmatprep.subr.bf16.mxu0 0
        %1888 = vmatpush1.bf16.msra.mxu0 0
        %1889 = vmatprep.subr.bf16.mxu0 0
        %1890 = vmatpush1.bf16.msra.mxu0 0
        %1891 = vmatprep.subr.bf16.mxu0 0
        %1892 = vmatpush1.bf16.msra.mxu0 0
        %1893 = vmatprep.subr.bf16.mxu0 0
        %1894 = vmatpush1.bf16.msra.mxu0 0
        %1895 = vmatprep.mubr.bf16.mxu0 0
        %1896 = vmatmul.mubr.bf16.gmra.mrb[0].mxu0 %v1849
        %v1897 = vpop.f32.mrb[0].mxu0
        %v1898 = vadd.f32 %v1846, %v1897
        %v1899 = vpop.f32.mrb[0].mxu0
        %v1900 = vpop.f32.mrb[0].mxu0
        %v1901 = vadd.f32 %v1846, %v1900
        %v1902 = vpop.f32.mrb[0].mxu0
        %1903 = vmatprep.mubr.bf16.mxu0 0
        %1904 = vmatmul.mubr.bf16.gmra.mrb[0].mxu0 %v1852
        %v1905 = vpop.f32.mrb[0].mxu0
        %v1906 = vadd.f32 %v1846, %v1905
        %v1907 = vpop.f32.mrb[0].mxu0
        %v1908 = vpop.f32.mrb[0].mxu0
        %v1909 = vadd.f32 %v1846, %v1908
        %v1910 = vpop.f32.mrb[0].mxu0
        %1911 = vmatprep.mubr.bf16.mxu0 0
        %1912 = vmatmul.mubr.bf16.gmra.mrb[0].mxu0 %v1855
        %v1913 = vpop.f32.mrb[0].mxu0
        %v1914 = vadd.f32 %v1846, %v1913
        %v1915 = vpop.f32.mrb[0].mxu0
        %v1916 = vpop.f32.mrb[0].mxu0
        %v1917 = vadd.f32 %v1846, %v1916
        %v1918 = vpop.f32.mrb[0].mxu0
        %1919 = vmatprep.mubr.bf16.mxu0 0
        %1920 = vmatmul.mubr.bf16.gmra.mrb[0].mxu0 %v1858
        %v1921 = vpop.f32.mrb[0].mxu0
        %v1922 = vadd.f32 %v1846, %v1921
        %v1923 = vpop.f32.mrb[0].mxu0
        %v1924 = vpop.f32.mrb[0].mxu0
        %v1925 = vadd.f32 %v1846, %v1924
        %v1926 = vpop.f32.mrb[0].mxu0
        %1927 = vdwg.mxu0
        %v1928 = vadd.f32 %v1898, %v531
        %v1929 = vadd.f32 %v1901, %v532
        %v1930 = vadd.f32 %v1906, %v533
        %v1931 = vadd.f32 %v1909, %v534
        %v1932 = vadd.f32 %v1914, %v535
        %v1933 = vadd.f32 %v1917, %v536
        %v1934 = vadd.f32 %v1922, %v537
        %v1935 = vadd.f32 %v1925, %v538
        %v1936 = vmax.f32 %v1928, 0.0
        %v1937 = vmax.f32 %v1929, 0.0
        %v1938 = vmax.f32 %v1930, 0.0
        %v1939 = vmax.f32 %v1931, 0.0
        %v1940 = vmax.f32 %v1932, 0.0
        %v1941 = vmax.f32 %v1933, 0.0
        %v1942 = vmax.f32 %v1934, 0.0
        %v1943 = vmax.f32 %v1935, 0.0
        %1944 = vst.msk [vmem:[%s478] sm:$0xff] %vm566, %v1936
        %1945 = vst.msk [vmem:[%s478 + $0x8] sm:$0xff] %vm566, %v1937
        %1946 = vst.msk [vmem:[%s478 + $0x10] sm:$0xff] %vm566, %v1938
        %1947 = vst.msk [vmem:[%s478 + $0x18] sm:$0xff] %vm566, %v1939
        %1948 = vst.msk [vmem:[%s478 + $0x20] sm:$0xff] %vm566, %v1940
        %1949 = vst.msk [vmem:[%s478 + $0x28] sm:$0xff] %vm566, %v1941
        %1950 = vst.msk [vmem:[%s478 + $0x30] sm:$0xff] %vm566, %v1942
        %1951 = vst.msk [vmem:[%s478 + $0x38] sm:$0xff] %vm566, %v1943
        %s1952 = sand.u32 %s277, 1
        %s1953 = scalar_lea.sflag [#allocation6], %s1952
        %s1954 = sand.u32 %s277, 1
        %s1955 = smul.addr %s1954, 64
        %s1956 = scalar_lea.vmem [#allocation10], %s1955
        // Predicated region
        $region77: #{bottleneck_forward.1} parent=55 // pred_check
          %p1957 = pneg %p287
        $region78: #{bottleneck_forward.1} parent=55 // pred_check_branch
          %1959 = sbr.rel (%p1957) target = $region80
        $region79: #{bottleneck_forward.1} parent=55 // pred_region
          %s1960 = smul.u32 4, %s34
          %s1962 = ssub.s32 1024, 1024
          %1963 = vsyncadd %s1953, %s1962
          %s1964 = smul.addr %s1960, 2
          %s1965 = smul.addr %s33, 32
          %s1966 = sadd.s32 %s1964, %s1965
          %s1967 = smul.addr %s1966, 128
          %s1968 = scalar_lea.hbm %s9, %s1967
          %s1969 = sshll.u32 %s1956, 4
          %s1970 = int_to_ptr.vmem [resolvable:$true] %s1969
          %1975 = dma.vmem_to_hbm [thread:$0]  %s1970, 1024, %s1968, %s1953, 128, 128, 8
        $region80: #{bottleneck_forward.1} parent=55 // pred_fallthru
          _
      $region56: #{bottleneck_forward.1} parent=5 // pred_fallthru
        _
      %p1976 = scmp.le.s32.totalorder 2, %s24
      // Predicated region
      $region81: #{bottleneck_forward.1} parent=5 // pred_check
        %p1977 = pneg %p1976
      $region82: #{bottleneck_forward.1} parent=5 // pred_check_branch
        %1979 = sbr.rel (%p1977) target = $region84
      $region83: #{bottleneck_forward.1} parent=5 // pred_region
        %s1980 = ssub.s32 %s24, 2
        // Predicated region
        $region85: #{bottleneck_forward.1} parent=83 // pred_check
          %p1981 = pneg %p293
        $region86: #{bottleneck_forward.1} parent=83 // pred_check_branch
          %1983 = sbr.rel (%p1981) target = $region88
        $region87: #{bottleneck_forward.1} parent=83 // pred_region
          %s1984 = sand.u32 %s278, 1
          %s1985 = scalar_lea.sflag [#allocation6], %s1984
          %s1986 = sand.u32 %s278, 1
          %s1987 = smul.addr %s1986, 64
          %s1988 = scalar_lea.vmem [#allocation10], %s1987
          %1989 = dma.done %s1985, 1024
        $region88: #{bottleneck_forward.1} parent=83 // pred_fallthru
          _
      $region84: #{bottleneck_forward.1} parent=5 // pred_fallthru
        _
    $region6: #{bottleneck_forward.1} parent=1 // loop_footer
      %s28 = sadd.s32 1, %s24
    $region7: #{bottleneck_forward.1} parent=1 // loop_footer_branch
      %23 = sbr.rel target = $region3
    $region8: #{bottleneck_forward.1} parent=1 // loop_exit
      _
    %1990 = vsyncpa [#allocation5], 1
    %s1991 = scalar_lea.sflag [#allocation5], 1
    %1992 = vsyncpa %s1991, 1
    %1993 = vsyncpa [#allocation8], 1
    %s1994 = scalar_lea.sflag [#allocation8], 1
    %1995 = vsyncpa %s1994, 1
    %1996 = vsyncpa [#allocation6], 1
    %s1997 = scalar_lea.sflag [#allocation6], 1
    %1998 = vsyncpa %s1997, 1

</llo_original>
